<compile_context>
chip_gen: v5e
topology: v5e:2x2
jax: 0.10.0
libtpu: 0.0.40
codegen_flags: <defaults>
</compile_context>

<pallas_src>
import functools
import math

import jax
import jax.numpy as jnp
from jax.experimental import pallas as pl
from jax.experimental.pallas import tpu as pltpu


# ---------------------------------------------------------------------------
# Kernel
# ---------------------------------------------------------------------------
def _attention_kernel(xq_ref, xk_ref, xv_ref,
                      wq_ref, bq_ref,
                      wk_ref, bk_ref,
                      wv_ref, bv_ref,
                      wo_ref, bo_ref,
                      o_ref,
                      *, n_heads: int):
    block_b, n_s, n_e = xq_ref.shape
    head_dim = n_e // n_heads
    rows = block_b * n_s
    n_out = wo_ref.shape[1]
    mxu_dtype = wq_ref.dtype            # bfloat16 (weights pre-cast in the wrapper)

    # ---- Q/K/V projections on a flattened (block_b * N_s, N_e) M dimension ----
    # (wrapper guarantees n_s % 8 == 0 or block_b == 1, so this collapse is layout-safe)
    xq = xq_ref[...].reshape(rows, n_e).astype(mxu_dtype)
    xk = xk_ref[...].reshape(rows, n_e).astype(mxu_dtype)
    xv = xv_ref[...].reshape(rows, n_e).astype(mxu_dtype)

    # Softmax scale is already folded into wq/bq by the wrapper.
    q2 = jnp.dot(xq, wq_ref[...], preferred_element_type=jnp.float32) + bq_ref[...]
    k2 = jnp.dot(xk, wk_ref[...], preferred_element_type=jnp.float32) + bk_ref[...]
    v2 = jnp.dot(xv, wv_ref[...], preferred_element_type=jnp.float32) + bv_ref[...]

    # One bf16 cast each, hoisted out of the per-head loop.
    q = q2.astype(mxu_dtype).reshape(block_b, n_s, n_e)
    k = k2.astype(mxu_dtype).reshape(block_b, n_s, n_e)
    v = v2.astype(mxu_dtype).reshape(block_b, n_s, n_e)

    wo_all = wo_ref[...]                # (n_e, n_out) bf16, read once

    # ---- per-head attention with the output projection fused into the loop ----
    acc = jnp.zeros((rows, n_out), jnp.float32)
    for h in range(n_heads):
        lo = h * head_dim
        hi = lo + head_dim
        qh = q[:, :, lo:hi]             # (block_b, N_s, Dh) bf16
        kh = k[:, :, lo:hi]
        vh = v[:, :, lo:hi]

        # Contraction on the last dim of both operands (MXU-native orientation).
        s = jnp.einsum('bqd,bkd->bqk', qh, kh,
                       preferred_element_type=jnp.float32)       # (block_b, N_s, N_s) f32
        # Numerically stable softmax over keys (f32).
        s = s - jnp.max(s, axis=-1, keepdims=True)
        p = jnp.exp(s)
        p = p * pl.reciprocal(jnp.sum(p, axis=-1, keepdims=True), approx=True)

        oh = jnp.einsum('bqk,bkd->bqd', p.astype(mxu_dtype), vh,
                        preferred_element_type=jnp.float32)      # (block_b, N_s, Dh)

        # Fused output projection: accumulate this head's contribution directly.
        acc = acc + jnp.dot(oh.reshape(rows, head_dim).astype(mxu_dtype),
                            wo_all[lo:hi, :],
                            preferred_element_type=jnp.float32)

    out = acc + bo_ref[...]
    o_ref[...] = out.reshape(o_ref.shape).astype(o_ref.dtype)


# ---------------------------------------------------------------------------
# Wrapper helpers
# ---------------------------------------------------------------------------
def _num_tensorcores_per_chip() -> int:
    """2 TensorCores per device on v7x (and v4 megacore); 1 on v5e/v6e. Default 1."""
    try:
        kind = jax.devices()[0].device_kind.lower()
        if "v7" in kind or "v4" in kind:
            return 2
    except Exception:
        pass
    return 1


def _vmem_bytes_estimate(block_b: int, n_s: int, n_e: int, n_out: int) -> int:
    """Rough per-grid-step VMEM working-set estimate (bytes)."""
    rows = block_b * n_s
    act_io = 2 * (3 * rows * n_e * 4 + rows * n_out * 4)      # double-buffered blocks
    weights = 2 * (3 * n_e * n_e + n_e * n_out) * 2           # bf16, worst case 2 bufs
    biases = 2 * (3 * n_e + n_out) * 4
    inter = 3 * rows * n_e * (4 + 2 + 2)                      # q/k/v f32 + bf16 + x bf16
    inter += 2 * block_b * n_s * n_s * 4                      # scores + probs (one head)
    inter += 2 * rows * n_out * 4                             # accumulator + out
    return act_io + weights + biases + inter


def _pick_block_b(batch: int, n_s: int, n_e: int, n_out: int, n_cores: int,
                  vmem_budget: int = 20 * 1024 * 1024) -> int:
    """Batches per grid block.

    Single-TC chips (v5e/v6e): the grid is a serial loop, so take the largest block_b
    that fits the VMEM budget (no splitting for nonexistent parallelism).
    Multi-TC chips (v7x): keep >= n_cores parallel grid blocks so every core gets work.
    """
    target = max(1, 256 // max(n_s, 1))
    if n_cores > 1 and batch >= n_cores:
        target = min(target, max(1, batch // n_cores))
    target = max(1, min(target, batch))
    while target > 1 and (batch % target != 0 or
                          _vmem_bytes_estimate(target, n_s, n_e, n_out) > vmem_budget):
        target -= 1
    return target


# ---------------------------------------------------------------------------
# Public entry point
# ---------------------------------------------------------------------------
def attention_pallas(Q, K, V, params, *, n_s: int, n_e: int, n_h: int, block_b=None):
    """Q, K, V: (B, N_s, N_e) float32. Returns (B, N_s, N_e) float32."""
    assert Q.shape == K.shape == V.shape
    assert Q.shape[1:] == (n_s, n_e)
    assert n_e % n_h == 0
    B = Q.shape[0]
    scale = 1.0 / math.sqrt(n_e / n_h)

    lane = 128
    n_out = ((n_e + lane - 1) // lane) * lane     # lane-dense output width

    wq, bq, wk, bk, wv, bv, wo, bo = params       # weights (in, out); biases (1, N_e)

    # Fold the softmax scale into the Q projection (x @ (wq*s) + bq*s == (x@wq + bq)*s).
    wq = wq * scale
    bq = bq * scale

    # Pad the output projection to a lane-dense width; padded columns are zeros and are
    # stripped after the kernel (keeps the kernel's store an unmasked full-lane vst).
    if n_out != n_e:
        wo = jnp.pad(wo, ((0, 0), (0, n_out - n_e)))
        bo = jnp.pad(bo, ((0, 0), (0, n_out - n_e)))

    # bf16 weights for the MXU path; biases stay f32 (added after f32 accumulation).
    mxu_dtype = jnp.bfloat16
    wq, wk, wv, wo = (w.astype(mxu_dtype) for w in (wq, wk, wv, wo))

    n_cores = _num_tensorcores_per_chip()
    if block_b is None:
        block_b = _pick_block_b(B, n_s, n_e, n_out, n_cores)
    if n_s % 8 != 0:
        # Keep the in-kernel (block_b, n_s, n_e) -> (rows, n_e) reshape a pure squeeze
        # so it never crosses an (8, 128) sublane tile boundary.
        block_b = 1
    assert B % block_b == 0
    grid = (B // block_b,)

    kern = functools.partial(_attention_kernel, n_heads=n_h)
    out_shape = jax.ShapeDtypeStruct((B, n_s, n_out), Q.dtype)

    def _build_call(single_buffer_weights: bool):
        wkw = dict(pipeline_mode=pl.Buffered(1)) if single_buffer_weights else {}
        act_spec = pl.BlockSpec((block_b, n_s, n_e), lambda b: (b, 0, 0))
        w_spec = pl.BlockSpec((n_e, n_e), lambda b: (0, 0), **wkw)
        b_spec = pl.BlockSpec((1, n_e), lambda b: (0, 0), **wkw)
        wo_spec = pl.BlockSpec((n_e, n_out), lambda b: (0, 0), **wkw)
        bo_spec = pl.BlockSpec((1, n_out), lambda b: (0, 0), **wkw)
        out_spec = pl.BlockSpec((block_b, n_s, n_out), lambda b: (b, 0, 0))
        return pl.pallas_call(
            kern,
            out_shape=out_shape,
            grid_spec=pltpu.PrefetchScalarGridSpec(
                num_scalar_prefetch=0,
                grid=grid,
                in_specs=[act_spec, act_spec, act_spec,
                          w_spec, b_spec,
                          w_spec, b_spec,
                          w_spec, b_spec,
                          wo_spec, bo_spec],
                out_specs=out_spec,
            ),
            compiler_params=pltpu.CompilerParams(
                dimension_semantics=("parallel",),
                vmem_limit_bytes=32 * 1024 * 1024,
            ),
        )

    args = (Q, K, V, wq, bq, wk, bk, wv, bv, wo, bo)
    try:
        # Preferred: constant weight blocks single-buffered (halves their VMEM footprint).
        out_padded = jax.block_until_ready(_build_call(True)(*args))
    except Exception:
        # Fallback for JAX versions without BlockSpec pipeline_mode support; results
        # are identical, only the weight buffering differs.
        out_padded = _build_call(False)(*args)

    return out_padded[:, :, :n_e] if n_out != n_e else out_padded


# ---------------------------------------------------------------------------
# Pure-JAX reference (mirrors the PyTorch forward)
# ---------------------------------------------------------------------------
def attention_reference(Q, K, V, params, *, n_s, n_e, n_h):
    wq, bq, wk, bk, wv, bv, wo, bo = params
    dh = n_e // n_h
    scale = 1.0 / math.sqrt(n_e / n_h)
    B = Q.shape[0]

    q = (Q @ wq + bq).reshape(B, n_s, n_h, dh).transpose(0, 2, 1, 3)   # (B,H,S,Dh)
    k = (K @ wk + bk).reshape(B, n_s, n_h, dh).transpose(0, 2, 1, 3)
    v = (V @ wv + bv).reshape(B, n_s, n_h, dh).transpose(0, 2, 1, 3)

    s = jnp.einsum("bhqd,bhkd->bhqk", q, k) * scale
    p = jax.nn.softmax(s, axis=-1)
    o = jnp.einsum("bhqk,bhkd->bhqd", p, v)
    o = o.transpose(0, 2, 1, 3).reshape(B, n_s, n_e)
    return o @ wo + bo


if __name__ == "__main__":
    # Small shapes consistent with the module: batch=2, seq N_s=8, embed N_e=32, heads N_h=4.
    B, N_s, N_e, N_h = 2, 8, 32, 4
    key = jax.random.PRNGKey(0)
    keys = jax.random.split(key, 11)

    Q = jax.random.normal(keys[0], (B, N_s, N_e), dtype=jnp.float32)
    K = jax.random.normal(keys[1], (B, N_s, N_e), dtype=jnp.float32)
    V = jax.random.normal(keys[2], (B, N_s, N_e), dtype=jnp.float32)

    # Deterministic parameter init (Linear weights stored as (in, out); biases as (1, N_e)).
    def make_linear(kw, kb):
        bound = 1.0 / math.sqrt(N_e)
        w = jax.random.uniform(kw, (N_e, N_e), minval=-bound, maxval=bound, dtype=jnp.float32)
        b = jax.random.uniform(kb, (1, N_e), minval=-bound, maxval=bound, dtype=jnp.float32)
        return w, b

    wq, bq = make_linear(keys[3], keys[4])
    wk, bk = make_linear(keys[5], keys[6])
    wv, bv = make_linear(keys[7], keys[8])
    wo, bo = make_linear(keys[9], keys[10])
    params = (wq, bq, wk, bk, wv, bv, wo, bo)

    out = attention_pallas(Q, K, V, params, n_s=N_s, n_e=N_e, n_h=N_h)
    out = jax.block_until_ready(out)

    ref = attention_reference(Q, K, V, params, n_s=N_s, n_e=N_e, n_h=N_h)
    assert out.shape == (B, N_s, N_e)
    # bf16 MXU operands + approx softmax reciprocal -> compare with a loose tolerance.
    max_err = float(jnp.max(jnp.abs(out - ref)))
    assert jnp.allclose(out, ref, atol=2e-2, rtol=2e-2), f"mismatch vs reference (max abs err {max_err})"

    print("KERNEL_OK")
</pallas_src>

<mosaic_0001>
module attributes {stable_mosaic.version = 11 : i64} {
  func.func @_attention_kernel(%arg0: i32, %arg1: memref<2x8x32xf32, #tpu.memory_space<vmem>>, %arg2: memref<2x8x32xf32, #tpu.memory_space<vmem>>, %arg3: memref<2x8x32xf32, #tpu.memory_space<vmem>>, %arg4: memref<32x32xbf16, #tpu.memory_space<vmem>>, %arg5: memref<1x32xf32, #tpu.memory_space<vmem>>, %arg6: memref<32x32xbf16, #tpu.memory_space<vmem>>, %arg7: memref<1x32xf32, #tpu.memory_space<vmem>>, %arg8: memref<32x32xbf16, #tpu.memory_space<vmem>>, %arg9: memref<1x32xf32, #tpu.memory_space<vmem>>, %arg10: memref<32x128xbf16, #tpu.memory_space<vmem>>, %arg11: memref<1x128xf32, #tpu.memory_space<vmem>>, %arg12: memref<2x8x128xf32, #tpu.memory_space<vmem>>) attributes {dimension_semantics = [#tpu.dimension_semantics<parallel>], iteration_bounds = array<i64: 1>, scalar_prefetch = 0 : i64, scratch_operands = 0 : i64, tpu.core_type = #tpu.core_type<tc>, window_params = [{transform_indices = @transform_0, window_bounds = array<i64: 2, 8, 32>}, {transform_indices = @transform_1, window_bounds = array<i64: 2, 8, 32>}, {transform_indices = @transform_2, window_bounds = array<i64: 2, 8, 32>}, {pipeline_mode = #tpu.pipeline_mode<synchronous>, transform_indices = @transform_3, window_bounds = array<i64: 32, 32>}, {pipeline_mode = #tpu.pipeline_mode<synchronous>, transform_indices = @transform_4, window_bounds = array<i64: 1, 32>}, {pipeline_mode = #tpu.pipeline_mode<synchronous>, transform_indices = @transform_5, window_bounds = array<i64: 32, 32>}, {pipeline_mode = #tpu.pipeline_mode<synchronous>, transform_indices = @transform_6, window_bounds = array<i64: 1, 32>}, {pipeline_mode = #tpu.pipeline_mode<synchronous>, transform_indices = @transform_7, window_bounds = array<i64: 32, 32>}, {pipeline_mode = #tpu.pipeline_mode<synchronous>, transform_indices = @transform_8, window_bounds = array<i64: 1, 32>}, {pipeline_mode = #tpu.pipeline_mode<synchronous>, transform_indices = @transform_9, window_bounds = array<i64: 32, 128>}, {pipeline_mode = #tpu.pipeline_mode<synchronous>, transform_indices = @transform_10, window_bounds = array<i64: 1, 128>}, {transform_indices = @transform_11, window_bounds = array<i64: 2, 8, 128>}]} {
    %c0 = arith.constant 0 : index
    %c0_0 = arith.constant 0 : index
    %c0_1 = arith.constant 0 : index
    %0 = vector.load %arg1[%c0, %c0_0, %c0_1] : memref<2x8x32xf32, #tpu.memory_space<vmem>>, vector<2x8x32xf32>
    %1 = vector.shape_cast %0 : vector<2x8x32xf32> to vector<16x32xf32>
    %2 = arith.truncf %1 : vector<16x32xf32> to vector<16x32xbf16>
    %c0_2 = arith.constant 0 : index
    %c0_3 = arith.constant 0 : index
    %c0_4 = arith.constant 0 : index
    %3 = vector.load %arg2[%c0_2, %c0_3, %c0_4] : memref<2x8x32xf32, #tpu.memory_space<vmem>>, vector<2x8x32xf32>
    %4 = vector.shape_cast %3 : vector<2x8x32xf32> to vector<16x32xf32>
    %5 = arith.truncf %4 : vector<16x32xf32> to vector<16x32xbf16>
    %c0_5 = arith.constant 0 : index
    %c0_6 = arith.constant 0 : index
    %c0_7 = arith.constant 0 : index
    %6 = vector.load %arg3[%c0_5, %c0_6, %c0_7] : memref<2x8x32xf32, #tpu.memory_space<vmem>>, vector<2x8x32xf32>
    %7 = vector.shape_cast %6 : vector<2x8x32xf32> to vector<16x32xf32>
    %8 = arith.truncf %7 : vector<16x32xf32> to vector<16x32xbf16>
    %c0_8 = arith.constant 0 : index
    %c0_9 = arith.constant 0 : index
    %9 = vector.load %arg4[%c0_8, %c0_9] : memref<32x32xbf16, #tpu.memory_space<vmem>>, vector<32x32xbf16>
    %cst = arith.constant dense<0.000000e+00> : vector<16x32xf32>
    %10 = tpu.matmul %2, %9, %cst {dimension_numbers = #tpu.dot_dimension_numbers<[1], [0], [0], [1], [0, 0, 1, 1], [], []>} : vector<16x32xbf16>, vector<32x32xbf16>, vector<16x32xf32> -> vector<16x32xf32>
    %c0_10 = arith.constant 0 : index
    %c0_11 = arith.constant 0 : index
    %11 = vector.load %arg5[%c0_10, %c0_11] : memref<1x32xf32, #tpu.memory_space<vmem>>, vector<1x32xf32>
    %12 = vector.broadcast %11 : vector<1x32xf32> to vector<16x32xf32>
    %13 = arith.addf %10, %12 : vector<16x32xf32>
    %c0_12 = arith.constant 0 : index
    %c0_13 = arith.constant 0 : index
    %14 = vector.load %arg6[%c0_12, %c0_13] : memref<32x32xbf16, #tpu.memory_space<vmem>>, vector<32x32xbf16>
    %cst_14 = arith.constant dense<0.000000e+00> : vector<16x32xf32>
    %15 = tpu.matmul %5, %14, %cst_14 {dimension_numbers = #tpu.dot_dimension_numbers<[1], [0], [0], [1], [0, 0, 1, 1], [], []>} : vector<16x32xbf16>, vector<32x32xbf16>, vector<16x32xf32> -> vector<16x32xf32>
    %c0_15 = arith.constant 0 : index
    %c0_16 = arith.constant 0 : index
    %16 = vector.load %arg7[%c0_15, %c0_16] : memref<1x32xf32, #tpu.memory_space<vmem>>, vector<1x32xf32>
    %17 = vector.broadcast %16 : vector<1x32xf32> to vector<16x32xf32>
    %18 = arith.addf %15, %17 : vector<16x32xf32>
    %c0_17 = arith.constant 0 : index
    %c0_18 = arith.constant 0 : index
    %19 = vector.load %arg8[%c0_17, %c0_18] : memref<32x32xbf16, #tpu.memory_space<vmem>>, vector<32x32xbf16>
    %cst_19 = arith.constant dense<0.000000e+00> : vector<16x32xf32>
    %20 = tpu.matmul %8, %19, %cst_19 {dimension_numbers = #tpu.dot_dimension_numbers<[1], [0], [0], [1], [0, 0, 1, 1], [], []>} : vector<16x32xbf16>, vector<32x32xbf16>, vector<16x32xf32> -> vector<16x32xf32>
    %c0_20 = arith.constant 0 : index
    %c0_21 = arith.constant 0 : index
    %21 = vector.load %arg9[%c0_20, %c0_21] : memref<1x32xf32, #tpu.memory_space<vmem>>, vector<1x32xf32>
    %22 = vector.broadcast %21 : vector<1x32xf32> to vector<16x32xf32>
    %23 = arith.addf %20, %22 : vector<16x32xf32>
    %24 = arith.truncf %13 : vector<16x32xf32> to vector<16x32xbf16>
    %25 = vector.shape_cast %24 : vector<16x32xbf16> to vector<2x8x32xbf16>
    %26 = arith.truncf %18 : vector<16x32xf32> to vector<16x32xbf16>
    %27 = vector.shape_cast %26 : vector<16x32xbf16> to vector<2x8x32xbf16>
    %28 = arith.truncf %23 : vector<16x32xf32> to vector<16x32xbf16>
    %29 = vector.shape_cast %28 : vector<16x32xbf16> to vector<2x8x32xbf16>
    %c0_22 = arith.constant 0 : index
    %c0_23 = arith.constant 0 : index
    %30 = vector.load %arg10[%c0_22, %c0_23] : memref<32x128xbf16, #tpu.memory_space<vmem>>, vector<32x128xbf16>
    %cst_24 = arith.constant 0.000000e+00 : f32
    %31 = vector.broadcast %cst_24 : f32 to vector<16x128xf32>
    %32 = vector.extract_strided_slice %25 {offsets = [0, 0, 0], sizes = [2, 8, 8], strides = [1, 1, 1]} : vector<2x8x32xbf16> to vector<2x8x8xbf16>
    %33 = vector.extract_strided_slice %27 {offsets = [0, 0, 0], sizes = [2, 8, 8], strides = [1, 1, 1]} : vector<2x8x32xbf16> to vector<2x8x8xbf16>
    %34 = vector.extract_strided_slice %29 {offsets = [0, 0, 0], sizes = [2, 8, 8], strides = [1, 1, 1]} : vector<2x8x32xbf16> to vector<2x8x8xbf16>
    "tpu.trace_start"() <{level = 10 : i32, message = "bqd,bkd->bqk"}> : () -> ()
    %cst_25 = arith.constant dense<0.000000e+00> : vector<2x8x8xf32>
    %35 = tpu.matmul %32, %33, %cst_25 {dimension_numbers = #tpu.dot_dimension_numbers<[2], [2], [1], [1], [0, 0, 0, 1, 1, 1], [0], [0]>} : vector<2x8x8xbf16>, vector<2x8x8xbf16>, vector<2x8x8xf32> -> vector<2x8x8xf32>
    "tpu.trace_stop"() : () -> ()
    %cst_26 = arith.constant dense<0xFF800000> : vector<2x8xf32>
    %36 = vector.multi_reduction <maximumf>, %35, %cst_26 [2] : vector<2x8x8xf32> to vector<2x8xf32>
    %37 = vector.shape_cast %36 : vector<2x8xf32> to vector<2x8x1xf32>
    %38 = vector.broadcast %37 : vector<2x8x1xf32> to vector<2x8x8xf32>
    %39 = arith.subf %35, %38 : vector<2x8x8xf32>
    %40 = math.exp %39 : vector<2x8x8xf32>
    %cst_27 = arith.constant dense<0.000000e+00> : vector<2x8xf32>
    %41 = vector.multi_reduction <add>, %40, %cst_27 [2] : vector<2x8x8xf32> to vector<2x8xf32>
    %42 = vector.shape_cast %41 : vector<2x8xf32> to vector<2x8x1xf32>
    %43 = tpu.reciprocal %42 {approx = true} : vector<2x8x1xf32> -> vector<2x8x1xf32>
    %44 = vector.broadcast %43 : vector<2x8x1xf32> to vector<2x8x8xf32>
    %45 = arith.mulf %40, %44 : vector<2x8x8xf32>
    %46 = arith.truncf %45 : vector<2x8x8xf32> to vector<2x8x8xbf16>
    "tpu.trace_start"() <{level = 10 : i32, message = "bqk,bkd->bqd"}> : () -> ()
    %cst_28 = arith.constant dense<0.000000e+00> : vector<2x8x8xf32>
    %47 = tpu.matmul %46, %34, %cst_28 {dimension_numbers = #tpu.dot_dimension_numbers<[2], [1], [1], [2], [0, 0, 0, 1, 1, 2], [0], [0]>} : vector<2x8x8xbf16>, vector<2x8x8xbf16>, vector<2x8x8xf32> -> vector<2x8x8xf32>
    "tpu.trace_stop"() : () -> ()
    %48 = vector.shape_cast %47 : vector<2x8x8xf32> to vector<16x8xf32>
    %49 = arith.truncf %48 : vector<16x8xf32> to vector<16x8xbf16>
    %50 = vector.extract_strided_slice %30 {offsets = [0, 0], sizes = [8, 128], strides = [1, 1]} : vector<32x128xbf16> to vector<8x128xbf16>
    %cst_29 = arith.constant dense<0.000000e+00> : vector<16x128xf32>
    %51 = tpu.matmul %49, %50, %cst_29 {dimension_numbers = #tpu.dot_dimension_numbers<[1], [0], [0], [1], [0, 0, 1, 1], [], []>} : vector<16x8xbf16>, vector<8x128xbf16>, vector<16x128xf32> -> vector<16x128xf32>
    %52 = arith.addf %31, %51 : vector<16x128xf32>
    %53 = vector.extract_strided_slice %25 {offsets = [0, 0, 8], sizes = [2, 8, 8], strides = [1, 1, 1]} : vector<2x8x32xbf16> to vector<2x8x8xbf16>
    %54 = vector.extract_strided_slice %27 {offsets = [0, 0, 8], sizes = [2, 8, 8], strides = [1, 1, 1]} : vector<2x8x32xbf16> to vector<2x8x8xbf16>
    %55 = vector.extract_strided_slice %29 {offsets = [0, 0, 8], sizes = [2, 8, 8], strides = [1, 1, 1]} : vector<2x8x32xbf16> to vector<2x8x8xbf16>
    "tpu.trace_start"() <{level = 10 : i32, message = "bqd,bkd->bqk"}> : () -> ()
    %cst_30 = arith.constant dense<0.000000e+00> : vector<2x8x8xf32>
    %56 = tpu.matmul %53, %54, %cst_30 {dimension_numbers = #tpu.dot_dimension_numbers<[2], [2], [1], [1], [0, 0, 0, 1, 1, 1], [0], [0]>} : vector<2x8x8xbf16>, vector<2x8x8xbf16>, vector<2x8x8xf32> -> vector<2x8x8xf32>
    "tpu.trace_stop"() : () -> ()
    %cst_31 = arith.constant dense<0xFF800000> : vector<2x8xf32>
    %57 = vector.multi_reduction <maximumf>, %56, %cst_31 [2] : vector<2x8x8xf32> to vector<2x8xf32>
    %58 = vector.shape_cast %57 : vector<2x8xf32> to vector<2x8x1xf32>
    %59 = vector.broadcast %58 : vector<2x8x1xf32> to vector<2x8x8xf32>
    %60 = arith.subf %56, %59 : vector<2x8x8xf32>
    %61 = math.exp %60 : vector<2x8x8xf32>
    %cst_32 = arith.constant dense<0.000000e+00> : vector<2x8xf32>
    %62 = vector.multi_reduction <add>, %61, %cst_32 [2] : vector<2x8x8xf32> to vector<2x8xf32>
    %63 = vector.shape_cast %62 : vector<2x8xf32> to vector<2x8x1xf32>
    %64 = tpu.reciprocal %63 {approx = true} : vector<2x8x1xf32> -> vector<2x8x1xf32>
    %65 = vector.broadcast %64 : vector<2x8x1xf32> to vector<2x8x8xf32>
    %66 = arith.mulf %61, %65 : vector<2x8x8xf32>
    %67 = arith.truncf %66 : vector<2x8x8xf32> to vector<2x8x8xbf16>
    "tpu.trace_start"() <{level = 10 : i32, message = "bqk,bkd->bqd"}> : () -> ()
    %cst_33 = arith.constant dense<0.000000e+00> : vector<2x8x8xf32>
    %68 = tpu.matmul %67, %55, %cst_33 {dimension_numbers = #tpu.dot_dimension_numbers<[2], [1], [1], [2], [0, 0, 0, 1, 1, 2], [0], [0]>} : vector<2x8x8xbf16>, vector<2x8x8xbf16>, vector<2x8x8xf32> -> vector<2x8x8xf32>
    "tpu.trace_stop"() : () -> ()
    %69 = vector.shape_cast %68 : vector<2x8x8xf32> to vector<16x8xf32>
    %70 = arith.truncf %69 : vector<16x8xf32> to vector<16x8xbf16>
    %71 = vector.extract_strided_slice %30 {offsets = [8, 0], sizes = [8, 128], strides = [1, 1]} : vector<32x128xbf16> to vector<8x128xbf16>
    %cst_34 = arith.constant dense<0.000000e+00> : vector<16x128xf32>
    %72 = tpu.matmul %70, %71, %cst_34 {dimension_numbers = #tpu.dot_dimension_numbers<[1], [0], [0], [1], [0, 0, 1, 1], [], []>} : vector<16x8xbf16>, vector<8x128xbf16>, vector<16x128xf32> -> vector<16x128xf32>
    %73 = arith.addf %52, %72 : vector<16x128xf32>
    %74 = vector.extract_strided_slice %25 {offsets = [0, 0, 16], sizes = [2, 8, 8], strides = [1, 1, 1]} : vector<2x8x32xbf16> to vector<2x8x8xbf16>
    %75 = vector.extract_strided_slice %27 {offsets = [0, 0, 16], sizes = [2, 8, 8], strides = [1, 1, 1]} : vector<2x8x32xbf16> to vector<2x8x8xbf16>
    %76 = vector.extract_strided_slice %29 {offsets = [0, 0, 16], sizes = [2, 8, 8], strides = [1, 1, 1]} : vector<2x8x32xbf16> to vector<2x8x8xbf16>
    "tpu.trace_start"() <{level = 10 : i32, message = "bqd,bkd->bqk"}> : () -> ()
    %cst_35 = arith.constant dense<0.000000e+00> : vector<2x8x8xf32>
    %77 = tpu.matmul %74, %75, %cst_35 {dimension_numbers = #tpu.dot_dimension_numbers<[2], [2], [1], [1], [0, 0, 0, 1, 1, 1], [0], [0]>} : vector<2x8x8xbf16>, vector<2x8x8xbf16>, vector<2x8x8xf32> -> vector<2x8x8xf32>
    "tpu.trace_stop"() : () -> ()
    %cst_36 = arith.constant dense<0xFF800000> : vector<2x8xf32>
    %78 = vector.multi_reduction <maximumf>, %77, %cst_36 [2] : vector<2x8x8xf32> to vector<2x8xf32>
    %79 = vector.shape_cast %78 : vector<2x8xf32> to vector<2x8x1xf32>
    %80 = vector.broadcast %79 : vector<2x8x1xf32> to vector<2x8x8xf32>
    %81 = arith.subf %77, %80 : vector<2x8x8xf32>
    %82 = math.exp %81 : vector<2x8x8xf32>
    %cst_37 = arith.constant dense<0.000000e+00> : vector<2x8xf32>
    %83 = vector.multi_reduction <add>, %82, %cst_37 [2] : vector<2x8x8xf32> to vector<2x8xf32>
    %84 = vector.shape_cast %83 : vector<2x8xf32> to vector<2x8x1xf32>
    %85 = tpu.reciprocal %84 {approx = true} : vector<2x8x1xf32> -> vector<2x8x1xf32>
    %86 = vector.broadcast %85 : vector<2x8x1xf32> to vector<2x8x8xf32>
    %87 = arith.mulf %82, %86 : vector<2x8x8xf32>
    %88 = arith.truncf %87 : vector<2x8x8xf32> to vector<2x8x8xbf16>
    "tpu.trace_start"() <{level = 10 : i32, message = "bqk,bkd->bqd"}> : () -> ()
    %cst_38 = arith.constant dense<0.000000e+00> : vector<2x8x8xf32>
    %89 = tpu.matmul %88, %76, %cst_38 {dimension_numbers = #tpu.dot_dimension_numbers<[2], [1], [1], [2], [0, 0, 0, 1, 1, 2], [0], [0]>} : vector<2x8x8xbf16>, vector<2x8x8xbf16>, vector<2x8x8xf32> -> vector<2x8x8xf32>
    "tpu.trace_stop"() : () -> ()
    %90 = vector.shape_cast %89 : vector<2x8x8xf32> to vector<16x8xf32>
    %91 = arith.truncf %90 : vector<16x8xf32> to vector<16x8xbf16>
    %92 = vector.extract_strided_slice %30 {offsets = [16, 0], sizes = [8, 128], strides = [1, 1]} : vector<32x128xbf16> to vector<8x128xbf16>
    %cst_39 = arith.constant dense<0.000000e+00> : vector<16x128xf32>
    %93 = tpu.matmul %91, %92, %cst_39 {dimension_numbers = #tpu.dot_dimension_numbers<[1], [0], [0], [1], [0, 0, 1, 1], [], []>} : vector<16x8xbf16>, vector<8x128xbf16>, vector<16x128xf32> -> vector<16x128xf32>
    %94 = arith.addf %73, %93 : vector<16x128xf32>
    %95 = vector.extract_strided_slice %25 {offsets = [0, 0, 24], sizes = [2, 8, 8], strides = [1, 1, 1]} : vector<2x8x32xbf16> to vector<2x8x8xbf16>
    %96 = vector.extract_strided_slice %27 {offsets = [0, 0, 24], sizes = [2, 8, 8], strides = [1, 1, 1]} : vector<2x8x32xbf16> to vector<2x8x8xbf16>
    %97 = vector.extract_strided_slice %29 {offsets = [0, 0, 24], sizes = [2, 8, 8], strides = [1, 1, 1]} : vector<2x8x32xbf16> to vector<2x8x8xbf16>
    "tpu.trace_start"() <{level = 10 : i32, message = "bqd,bkd->bqk"}> : () -> ()
    %cst_40 = arith.constant dense<0.000000e+00> : vector<2x8x8xf32>
    %98 = tpu.matmul %95, %96, %cst_40 {dimension_numbers = #tpu.dot_dimension_numbers<[2], [2], [1], [1], [0, 0, 0, 1, 1, 1], [0], [0]>} : vector<2x8x8xbf16>, vector<2x8x8xbf16>, vector<2x8x8xf32> -> vector<2x8x8xf32>
    "tpu.trace_stop"() : () -> ()
    %cst_41 = arith.constant dense<0xFF800000> : vector<2x8xf32>
    %99 = vector.multi_reduction <maximumf>, %98, %cst_41 [2] : vector<2x8x8xf32> to vector<2x8xf32>
    %100 = vector.shape_cast %99 : vector<2x8xf32> to vector<2x8x1xf32>
    %101 = vector.broadcast %100 : vector<2x8x1xf32> to vector<2x8x8xf32>
    %102 = arith.subf %98, %101 : vector<2x8x8xf32>
    %103 = math.exp %102 : vector<2x8x8xf32>
    %cst_42 = arith.constant dense<0.000000e+00> : vector<2x8xf32>
    %104 = vector.multi_reduction <add>, %103, %cst_42 [2] : vector<2x8x8xf32> to vector<2x8xf32>
    %105 = vector.shape_cast %104 : vector<2x8xf32> to vector<2x8x1xf32>
    %106 = tpu.reciprocal %105 {approx = true} : vector<2x8x1xf32> -> vector<2x8x1xf32>
    %107 = vector.broadcast %106 : vector<2x8x1xf32> to vector<2x8x8xf32>
    %108 = arith.mulf %103, %107 : vector<2x8x8xf32>
    %109 = arith.truncf %108 : vector<2x8x8xf32> to vector<2x8x8xbf16>
    "tpu.trace_start"() <{level = 10 : i32, message = "bqk,bkd->bqd"}> : () -> ()
    %cst_43 = arith.constant dense<0.000000e+00> : vector<2x8x8xf32>
    %110 = tpu.matmul %109, %97, %cst_43 {dimension_numbers = #tpu.dot_dimension_numbers<[2], [1], [1], [2], [0, 0, 0, 1, 1, 2], [0], [0]>} : vector<2x8x8xbf16>, vector<2x8x8xbf16>, vector<2x8x8xf32> -> vector<2x8x8xf32>
    "tpu.trace_stop"() : () -> ()
    %111 = vector.shape_cast %110 : vector<2x8x8xf32> to vector<16x8xf32>
    %112 = arith.truncf %111 : vector<16x8xf32> to vector<16x8xbf16>
    %113 = vector.extract_strided_slice %30 {offsets = [24, 0], sizes = [8, 128], strides = [1, 1]} : vector<32x128xbf16> to vector<8x128xbf16>
    %cst_44 = arith.constant dense<0.000000e+00> : vector<16x128xf32>
    %114 = tpu.matmul %112, %113, %cst_44 {dimension_numbers = #tpu.dot_dimension_numbers<[1], [0], [0], [1], [0, 0, 1, 1], [], []>} : vector<16x8xbf16>, vector<8x128xbf16>, vector<16x128xf32> -> vector<16x128xf32>
    %115 = arith.addf %94, %114 : vector<16x128xf32>
    %c0_45 = arith.constant 0 : index
    %c0_46 = arith.constant 0 : index
    %116 = vector.load %arg11[%c0_45, %c0_46] : memref<1x128xf32, #tpu.memory_space<vmem>>, vector<1x128xf32>
    %117 = vector.broadcast %116 : vector<1x128xf32> to vector<16x128xf32>
    %118 = arith.addf %115, %117 : vector<16x128xf32>
    %119 = vector.shape_cast %118 : vector<16x128xf32> to vector<2x8x128xf32>
    %c0_47 = arith.constant 0 : index
    %c0_48 = arith.constant 0 : index
    %c0_49 = arith.constant 0 : index
    %120 = vector.load %arg12[%c0_47, %c0_48, %c0_49] : memref<2x8x128xf32, #tpu.memory_space<vmem>>, vector<2x8x128xf32>
    tpu.vector_store %arg12[%c0_47, %c0_48, %c0_49], %119 {strides = array<i32>} : memref<2x8x128xf32, #tpu.memory_space<vmem>>, vector<2x8x128xf32>,
    return
  }
  func.func @transform_0(%arg0: i32) -> (i32, i32, i32) {
    %c0_i32 = arith.constant 0 : i32
    %c0_i32_0 = arith.constant 0 : i32
    %c0_i32_1 = arith.constant 0 : i32
    return %arg0, %c0_i32, %c0_i32_0 : i32, i32, i32
  }
  func.func @transform_1(%arg0: i32) -> (i32, i32, i32) {
    %c0_i32 = arith.constant 0 : i32
    %c0_i32_0 = arith.constant 0 : i32
    %c0_i32_1 = arith.constant 0 : i32
    return %arg0, %c0_i32, %c0_i32_0 : i32, i32, i32
  }
  func.func @transform_2(%arg0: i32) -> (i32, i32, i32) {
    %c0_i32 = arith.constant 0 : i32
    %c0_i32_0 = arith.constant 0 : i32
    %c0_i32_1 = arith.constant 0 : i32
    return %arg0, %c0_i32, %c0_i32_0 : i32, i32, i32
  }
  func.func @transform_3(%arg0: i32) -> (i32, i32) {
    %c0_i32 = arith.constant 0 : i32
    %c0_i32_0 = arith.constant 0 : i32
    %c0_i32_1 = arith.constant 0 : i32
    return %c0_i32, %c0_i32_0 : i32, i32
  }
  func.func @transform_4(%arg0: i32) -> (i32, i32) {
    %c0_i32 = arith.constant 0 : i32
    %c0_i32_0 = arith.constant 0 : i32
    %c0_i32_1 = arith.constant 0 : i32
    return %c0_i32, %c0_i32_0 : i32, i32
  }
  func.func @transform_5(%arg0: i32) -> (i32, i32) {
    %c0_i32 = arith.constant 0 : i32
    %c0_i32_0 = arith.constant 0 : i32
    %c0_i32_1 = arith.constant 0 : i32
    return %c0_i32, %c0_i32_0 : i32, i32
  }
  func.func @transform_6(%arg0: i32) -> (i32, i32) {
    %c0_i32 = arith.constant 0 : i32
    %c0_i32_0 = arith.constant 0 : i32
    %c0_i32_1 = arith.constant 0 : i32
    return %c0_i32, %c0_i32_0 : i32, i32
  }
  func.func @transform_7(%arg0: i32) -> (i32, i32) {
    %c0_i32 = arith.constant 0 : i32
    %c0_i32_0 = arith.constant 0 : i32
    %c0_i32_1 = arith.constant 0 : i32
    return %c0_i32, %c0_i32_0 : i32, i32
  }
  func.func @transform_8(%arg0: i32) -> (i32, i32) {
    %c0_i32 = arith.constant 0 : i32
    %c0_i32_0 = arith.constant 0 : i32
    %c0_i32_1 = arith.constant 0 : i32
    return %c0_i32, %c0_i32_0 : i32, i32
  }
  func.func @transform_9(%arg0: i32) -> (i32, i32) {
    %c0_i32 = arith.constant 0 : i32
    %c0_i32_0 = arith.constant 0 : i32
    %c0_i32_1 = arith.constant 0 : i32
    return %c0_i32, %c0_i32_0 : i32, i32
  }
  func.func @transform_10(%arg0: i32) -> (i32, i32) {
    %c0_i32 = arith.constant 0 : i32
    %c0_i32_0 = arith.constant 0 : i32
    %c0_i32_1 = arith.constant 0 : i32
    return %c0_i32, %c0_i32_0 : i32, i32
  }
  func.func @transform_11(%arg0: i32) -> (i32, i32, i32) {
    %c0_i32 = arith.constant 0 : i32
    %c0_i32_0 = arith.constant 0 : i32
    %c0_i32_1 = arith.constant 0 : i32
    return %arg0, %c0_i32, %c0_i32_0 : i32, i32, i32
  }
}

module attributes {stable_mosaic.version = 11 : i64} {
  func.func @_attention_kernel(%arg0: i32, %arg1: memref<2x8x32xf32, #tpu.memory_space<vmem>>, %arg2: memref<2x8x32xf32, #tpu.memory_space<vmem>>, %arg3: memref<2x8x32xf32, #tpu.memory_space<vmem>>, %arg4: memref<32x32xbf16, #tpu.memory_space<vmem>>, %arg5: memref<1x32xf32, #tpu.memory_space<vmem>>, %arg6: memref<32x32xbf16, #tpu.memory_space<vmem>>, %arg7: memref<1x32xf32, #tpu.memory_space<vmem>>, %arg8: memref<32x32xbf16, #tpu.memory_space<vmem>>, %arg9: memref<1x32xf32, #tpu.memory_space<vmem>>, %arg10: memref<32x128xbf16, #tpu.memory_space<vmem>>, %arg11: memref<1x128xf32, #tpu.memory_space<vmem>>, %arg12: memref<2x8x128xf32, #tpu.memory_space<vmem>>) attributes {dimension_semantics = [#tpu.dimension_semantics<parallel>], iteration_bounds = array<i64: 1>, scalar_prefetch = 0 : i64, scratch_operands = 0 : i64, tpu.core_type = #tpu.core_type<tc>, window_params = [{transform_indices = @transform_0, window_bounds = array<i64: 2, 8, 32>}, {transform_indices = @transform_1, window_bounds = array<i64: 2, 8, 32>}, {transform_indices = @transform_2, window_bounds = array<i64: 2, 8, 32>}, {pipeline_mode = #tpu.pipeline_mode<synchronous>, transform_indices = @transform_3, window_bounds = array<i64: 32, 32>}, {pipeline_mode = #tpu.pipeline_mode<synchronous>, transform_indices = @transform_4, window_bounds = array<i64: 1, 32>}, {pipeline_mode = #tpu.pipeline_mode<synchronous>, transform_indices = @transform_5, window_bounds = array<i64: 32, 32>}, {pipeline_mode = #tpu.pipeline_mode<synchronous>, transform_indices = @transform_6, window_bounds = array<i64: 1, 32>}, {pipeline_mode = #tpu.pipeline_mode<synchronous>, transform_indices = @transform_7, window_bounds = array<i64: 32, 32>}, {pipeline_mode = #tpu.pipeline_mode<synchronous>, transform_indices = @transform_8, window_bounds = array<i64: 1, 32>}, {pipeline_mode = #tpu.pipeline_mode<synchronous>, transform_indices = @transform_9, window_bounds = array<i64: 32, 128>}, {pipeline_mode = #tpu.pipeline_mode<synchronous>, transform_indices = @transform_10, window_bounds = array<i64: 1, 128>}, {transform_indices = @transform_11, window_bounds = array<i64: 2, 8, 128>}]} {
    %c0 = arith.constant 0 : index
    %c0_0 = arith.constant 0 : index
    %c0_1 = arith.constant 0 : index
    %0 = vector.load %arg1[%c0, %c0_0, %c0_1] : memref<2x8x32xf32, #tpu.memory_space<vmem>>, vector<2x8x32xf32>
    %1 = vector.shape_cast %0 : vector<2x8x32xf32> to vector<16x32xf32>
    %2 = arith.truncf %1 : vector<16x32xf32> to vector<16x32xbf16>
    %c0_2 = arith.constant 0 : index
    %c0_3 = arith.constant 0 : index
    %c0_4 = arith.constant 0 : index
    %3 = vector.load %arg2[%c0_2, %c0_3, %c0_4] : memref<2x8x32xf32, #tpu.memory_space<vmem>>, vector<2x8x32xf32>
    %4 = vector.shape_cast %3 : vector<2x8x32xf32> to vector<16x32xf32>
    %5 = arith.truncf %4 : vector<16x32xf32> to vector<16x32xbf16>
    %c0_5 = arith.constant 0 : index
    %c0_6 = arith.constant 0 : index
    %c0_7 = arith.constant 0 : index
    %6 = vector.load %arg3[%c0_5, %c0_6, %c0_7] : memref<2x8x32xf32, #tpu.memory_space<vmem>>, vector<2x8x32xf32>
    %7 = vector.shape_cast %6 : vector<2x8x32xf32> to vector<16x32xf32>
    %8 = arith.truncf %7 : vector<16x32xf32> to vector<16x32xbf16>
    %c0_8 = arith.constant 0 : index
    %c0_9 = arith.constant 0 : index
    %9 = vector.load %arg4[%c0_8, %c0_9] : memref<32x32xbf16, #tpu.memory_space<vmem>>, vector<32x32xbf16>
    %cst = arith.constant dense<0.000000e+00> : vector<16x32xf32>
    %10 = tpu.matmul %2, %9, %cst {dimension_numbers = #tpu.dot_dimension_numbers<[1], [0], [0], [1], [0, 0, 1, 1], [], []>} : vector<16x32xbf16>, vector<32x32xbf16>, vector<16x32xf32> -> vector<16x32xf32>
    %c0_10 = arith.constant 0 : index
    %c0_11 = arith.constant 0 : index
    %11 = vector.load %arg5[%c0_10, %c0_11] : memref<1x32xf32, #tpu.memory_space<vmem>>, vector<1x32xf32>
    %12 = vector.broadcast %11 : vector<1x32xf32> to vector<16x32xf32>
    %13 = arith.addf %10, %12 : vector<16x32xf32>
    %c0_12 = arith.constant 0 : index
    %c0_13 = arith.constant 0 : index
    %14 = vector.load %arg6[%c0_12, %c0_13] : memref<32x32xbf16, #tpu.memory_space<vmem>>, vector<32x32xbf16>
    %cst_14 = arith.constant dense<0.000000e+00> : vector<16x32xf32>
    %15 = tpu.matmul %5, %14, %cst_14 {dimension_numbers = #tpu.dot_dimension_numbers<[1], [0], [0], [1], [0, 0, 1, 1], [], []>} : vector<16x32xbf16>, vector<32x32xbf16>, vector<16x32xf32> -> vector<16x32xf32>
    %c0_15 = arith.constant 0 : index
    %c0_16 = arith.constant 0 : index
    %16 = vector.load %arg7[%c0_15, %c0_16] : memref<1x32xf32, #tpu.memory_space<vmem>>, vector<1x32xf32>
    %17 = vector.broadcast %16 : vector<1x32xf32> to vector<16x32xf32>
    %18 = arith.addf %15, %17 : vector<16x32xf32>
    %c0_17 = arith.constant 0 : index
    %c0_18 = arith.constant 0 : index
    %19 = vector.load %arg8[%c0_17, %c0_18] : memref<32x32xbf16, #tpu.memory_space<vmem>>, vector<32x32xbf16>
    %cst_19 = arith.constant dense<0.000000e+00> : vector<16x32xf32>
    %20 = tpu.matmul %8, %19, %cst_19 {dimension_numbers = #tpu.dot_dimension_numbers<[1], [0], [0], [1], [0, 0, 1, 1], [], []>} : vector<16x32xbf16>, vector<32x32xbf16>, vector<16x32xf32> -> vector<16x32xf32>
    %c0_20 = arith.constant 0 : index
    %c0_21 = arith.constant 0 : index
    %21 = vector.load %arg9[%c0_20, %c0_21] : memref<1x32xf32, #tpu.memory_space<vmem>>, vector<1x32xf32>
    %22 = vector.broadcast %21 : vector<1x32xf32> to vector<16x32xf32>
    %23 = arith.addf %20, %22 : vector<16x32xf32>
    %24 = arith.truncf %13 : vector<16x32xf32> to vector<16x32xbf16>
    %25 = vector.shape_cast %24 : vector<16x32xbf16> to vector<2x8x32xbf16>
    %26 = arith.truncf %18 : vector<16x32xf32> to vector<16x32xbf16>
    %27 = vector.shape_cast %26 : vector<16x32xbf16> to vector<2x8x32xbf16>
    %28 = arith.truncf %23 : vector<16x32xf32> to vector<16x32xbf16>
    %29 = vector.shape_cast %28 : vector<16x32xbf16> to vector<2x8x32xbf16>
    %c0_22 = arith.constant 0 : index
    %c0_23 = arith.constant 0 : index
    %30 = vector.load %arg10[%c0_22, %c0_23] : memref<32x128xbf16, #tpu.memory_space<vmem>>, vector<32x128xbf16>
    %cst_24 = arith.constant 0.000000e+00 : f32
    %31 = vector.broadcast %cst_24 : f32 to vector<16x128xf32>
    %32 = vector.extract_strided_slice %25 {offsets = [0, 0, 0], sizes = [2, 8, 8], strides = [1, 1, 1]} : vector<2x8x32xbf16> to vector<2x8x8xbf16>
    %33 = vector.extract_strided_slice %27 {offsets = [0, 0, 0], sizes = [2, 8, 8], strides = [1, 1, 1]} : vector<2x8x32xbf16> to vector<2x8x8xbf16>
    %34 = vector.extract_strided_slice %29 {offsets = [0, 0, 0], sizes = [2, 8, 8], strides = [1, 1, 1]} : vector<2x8x32xbf16> to vector<2x8x8xbf16>
    "tpu.trace_start"() <{level = 10 : i32, message = "bqd,bkd->bqk"}> : () -> ()
    %cst_25 = arith.constant dense<0.000000e+00> : vector<2x8x8xf32>
    %35 = tpu.matmul %32, %33, %cst_25 {dimension_numbers = #tpu.dot_dimension_numbers<[2], [2], [1], [1], [0, 0, 0, 1, 1, 1], [0], [0]>} : vector<2x8x8xbf16>, vector<2x8x8xbf16>, vector<2x8x8xf32> -> vector<2x8x8xf32>
    "tpu.trace_stop"() : () -> ()
    %cst_26 = arith.constant dense<0xFF800000> : vector<2x8xf32>
    %36 = vector.multi_reduction <maximumf>, %35, %cst_26 [2] : vector<2x8x8xf32> to vector<2x8xf32>
    %37 = vector.shape_cast %36 : vector<2x8xf32> to vector<2x8x1xf32>
    %38 = vector.broadcast %37 : vector<2x8x1xf32> to vector<2x8x8xf32>
    %39 = arith.subf %35, %38 : vector<2x8x8xf32>
    %40 = math.exp %39 : vector<2x8x8xf32>
    %cst_27 = arith.constant dense<0.000000e+00> : vector<2x8xf32>
    %41 = vector.multi_reduction <add>, %40, %cst_27 [2] : vector<2x8x8xf32> to vector<2x8xf32>
    %42 = vector.shape_cast %41 : vector<2x8xf32> to vector<2x8x1xf32>
    %43 = tpu.reciprocal %42 {approx = true} : vector<2x8x1xf32> -> vector<2x8x1xf32>
    %44 = vector.broadcast %43 : vector<2x8x1xf32> to vector<2x8x8xf32>
    %45 = arith.mulf %40, %44 : vector<2x8x8xf32>
    %46 = arith.truncf %45 : vector<2x8x8xf32> to vector<2x8x8xbf16>
    "tpu.trace_start"() <{level = 10 : i32, message = "bqk,bkd->bqd"}> : () -> ()
    %cst_28 = arith.constant dense<0.000000e+00> : vector<2x8x8xf32>
    %47 = tpu.matmul %46, %34, %cst_28 {dimension_numbers = #tpu.dot_dimension_numbers<[2], [1], [1], [2], [0, 0, 0, 1, 1, 2], [0], [0]>} : vector<2x8x8xbf16>, vector<2x8x8xbf16>, vector<2x8x8xf32> -> vector<2x8x8xf32>
    "tpu.trace_stop"() : () -> ()
    %48 = vector.shape_cast %47 : vector<2x8x8xf32> to vector<16x8xf32>
    %49 = arith.truncf %48 : vector<16x8xf32> to vector<16x8xbf16>
    %50 = vector.extract_strided_slice %30 {offsets = [0, 0], sizes = [8, 128], strides = [1, 1]} : vector<32x128xbf16> to vector<8x128xbf16>
    %cst_29 = arith.constant dense<0.000000e+00> : vector<16x128xf32>
    %51 = tpu.matmul %49, %50, %cst_29 {dimension_numbers = #tpu.dot_dimension_numbers<[1], [0], [0], [1], [0, 0, 1, 1], [], []>} : vector<16x8xbf16>, vector<8x128xbf16>, vector<16x128xf32> -> vector<16x128xf32>
    %52 = arith.addf %31, %51 : vector<16x128xf32>
    %53 = vector.extract_strided_slice %25 {offsets = [0, 0, 8], sizes = [2, 8, 8], strides = [1, 1, 1]} : vector<2x8x32xbf16> to vector<2x8x8xbf16>
    %54 = vector.extract_strided_slice %27 {offsets = [0, 0, 8], sizes = [2, 8, 8], strides = [1, 1, 1]} : vector<2x8x32xbf16> to vector<2x8x8xbf16>
    %55 = vector.extract_strided_slice %29 {offsets = [0, 0, 8], sizes = [2, 8, 8], strides = [1, 1, 1]} : vector<2x8x32xbf16> to vector<2x8x8xbf16>
    "tpu.trace_start"() <{level = 10 : i32, message = "bqd,bkd->bqk"}> : () -> ()
    %cst_30 = arith.constant dense<0.000000e+00> : vector<2x8x8xf32>
    %56 = tpu.matmul %53, %54, %cst_30 {dimension_numbers = #tpu.dot_dimension_numbers<[2], [2], [1], [1], [0, 0, 0, 1, 1, 1], [0], [0]>} : vector<2x8x8xbf16>, vector<2x8x8xbf16>, vector<2x8x8xf32> -> vector<2x8x8xf32>
    "tpu.trace_stop"() : () -> ()
    %cst_31 = arith.constant dense<0xFF800000> : vector<2x8xf32>
    %57 = vector.multi_reduction <maximumf>, %56, %cst_31 [2] : vector<2x8x8xf32> to vector<2x8xf32>
    %58 = vector.shape_cast %57 : vector<2x8xf32> to vector<2x8x1xf32>
    %59 = vector.broadcast %58 : vector<2x8x1xf32> to vector<2x8x8xf32>
    %60 = arith.subf %56, %59 : vector<2x8x8xf32>
    %61 = math.exp %60 : vector<2x8x8xf32>
    %cst_32 = arith.constant dense<0.000000e+00> : vector<2x8xf32>
    %62 = vector.multi_reduction <add>, %61, %cst_32 [2] : vector<2x8x8xf32> to vector<2x8xf32>
    %63 = vector.shape_cast %62 : vector<2x8xf32> to vector<2x8x1xf32>
    %64 = tpu.reciprocal %63 {approx = true} : vector<2x8x1xf32> -> vector<2x8x1xf32>
    %65 = vector.broadcast %64 : vector<2x8x1xf32> to vector<2x8x8xf32>
    %66 = arith.mulf %61, %65 : vector<2x8x8xf32>
    %67 = arith.truncf %66 : vector<2x8x8xf32> to vector<2x8x8xbf16>
    "tpu.trace_start"() <{level = 10 : i32, message = "bqk,bkd->bqd"}> : () -> ()
    %cst_33 = arith.constant dense<0.000000e+00> : vector<2x8x8xf32>
    %68 = tpu.matmul %67, %55, %cst_33 {dimension_numbers = #tpu.dot_dimension_numbers<[2], [1], [1], [2], [0, 0, 0, 1, 1, 2], [0], [0]>} : vector<2x8x8xbf16>, vector<2x8x8xbf16>, vector<2x8x8xf32> -> vector<2x8x8xf32>
    "tpu.trace_stop"() : () -> ()
    %69 = vector.shape_cast %68 : vector<2x8x8xf32> to vector<16x8xf32>
    %70 = arith.truncf %69 : vector<16x8xf32> to vector<16x8xbf16>
    %71 = vector.extract_strided_slice %30 {offsets = [8, 0], sizes = [8, 128], strides = [1, 1]} : vector<32x128xbf16> to vector<8x128xbf16>
    %cst_34 = arith.constant dense<0.000000e+00> : vector<16x128xf32>
    %72 = tpu.matmul %70, %71, %cst_34 {dimension_numbers = #tpu.dot_dimension_numbers<[1], [0], [0], [1], [0, 0, 1, 1], [], []>} : vector<16x8xbf16>, vector<8x128xbf16>, vector<16x128xf32> -> vector<16x128xf32>
    %73 = arith.addf %52, %72 : vector<16x128xf32>
    %74 = vector.extract_strided_slice %25 {offsets = [0, 0, 16], sizes = [2, 8, 8], strides = [1, 1, 1]} : vector<2x8x32xbf16> to vector<2x8x8xbf16>
    %75 = vector.extract_strided_slice %27 {offsets = [0, 0, 16], sizes = [2, 8, 8], strides = [1, 1, 1]} : vector<2x8x32xbf16> to vector<2x8x8xbf16>
    %76 = vector.extract_strided_slice %29 {offsets = [0, 0, 16], sizes = [2, 8, 8], strides = [1, 1, 1]} : vector<2x8x32xbf16> to vector<2x8x8xbf16>
    "tpu.trace_start"() <{level = 10 : i32, message = "bqd,bkd->bqk"}> : () -> ()
    %cst_35 = arith.constant dense<0.000000e+00> : vector<2x8x8xf32>
    %77 = tpu.matmul %74, %75, %cst_35 {dimension_numbers = #tpu.dot_dimension_numbers<[2], [2], [1], [1], [0, 0, 0, 1, 1, 1], [0], [0]>} : vector<2x8x8xbf16>, vector<2x8x8xbf16>, vector<2x8x8xf32> -> vector<2x8x8xf32>
    "tpu.trace_stop"() : () -> ()
    %cst_36 = arith.constant dense<0xFF800000> : vector<2x8xf32>
    %78 = vector.multi_reduction <maximumf>, %77, %cst_36 [2] : vector<2x8x8xf32> to vector<2x8xf32>
    %79 = vector.shape_cast %78 : vector<2x8xf32> to vector<2x8x1xf32>
    %80 = vector.broadcast %79 : vector<2x8x1xf32> to vector<2x8x8xf32>
    %81 = arith.subf %77, %80 : vector<2x8x8xf32>
    %82 = math.exp %81 : vector<2x8x8xf32>
    %cst_37 = arith.constant dense<0.000000e+00> : vector<2x8xf32>
    %83 = vector.multi_reduction <add>, %82, %cst_37 [2] : vector<2x8x8xf32> to vector<2x8xf32>
    %84 = vector.shape_cast %83 : vector<2x8xf32> to vector<2x8x1xf32>
    %85 = tpu.reciprocal %84 {approx = true} : vector<2x8x1xf32> -> vector<2x8x1xf32>
    %86 = vector.broadcast %85 : vector<2x8x1xf32> to vector<2x8x8xf32>
    %87 = arith.mulf %82, %86 : vector<2x8x8xf32>
    %88 = arith.truncf %87 : vector<2x8x8xf32> to vector<2x8x8xbf16>
    "tpu.trace_start"() <{level = 10 : i32, message = "bqk,bkd->bqd"}> : () -> ()
    %cst_38 = arith.constant dense<0.000000e+00> : vector<2x8x8xf32>
    %89 = tpu.matmul %88, %76, %cst_38 {dimension_numbers = #tpu.dot_dimension_numbers<[2], [1], [1], [2], [0, 0, 0, 1, 1, 2], [0], [0]>} : vector<2x8x8xbf16>, vector<2x8x8xbf16>, vector<2x8x8xf32> -> vector<2x8x8xf32>
    "tpu.trace_stop"() : () -> ()
    %90 = vector.shape_cast %89 : vector<2x8x8xf32> to vector<16x8xf32>
    %91 = arith.truncf %90 : vector<16x8xf32> to vector<16x8xbf16>
    %92 = vector.extract_strided_slice %30 {offsets = [16, 0], sizes = [8, 128], strides = [1, 1]} : vector<32x128xbf16> to vector<8x128xbf16>
    %cst_39 = arith.constant dense<0.000000e+00> : vector<16x128xf32>
    %93 = tpu.matmul %91, %92, %cst_39 {dimension_numbers = #tpu.dot_dimension_numbers<[1], [0], [0], [1], [0, 0, 1, 1], [], []>} : vector<16x8xbf16>, vector<8x128xbf16>, vector<16x128xf32> -> vector<16x128xf32>
    %94 = arith.addf %73, %93 : vector<16x128xf32>
    %95 = vector.extract_strided_slice %25 {offsets = [0, 0, 24], sizes = [2, 8, 8], strides = [1, 1, 1]} : vector<2x8x32xbf16> to vector<2x8x8xbf16>
    %96 = vector.extract_strided_slice %27 {offsets = [0, 0, 24], sizes = [2, 8, 8], strides = [1, 1, 1]} : vector<2x8x32xbf16> to vector<2x8x8xbf16>
    %97 = vector.extract_strided_slice %29 {offsets = [0, 0, 24], sizes = [2, 8, 8], strides = [1, 1, 1]} : vector<2x8x32xbf16> to vector<2x8x8xbf16>
    "tpu.trace_start"() <{level = 10 : i32, message = "bqd,bkd->bqk"}> : () -> ()
    %cst_40 = arith.constant dense<0.000000e+00> : vector<2x8x8xf32>
    %98 = tpu.matmul %95, %96, %cst_40 {dimension_numbers = #tpu.dot_dimension_numbers<[2], [2], [1], [1], [0, 0, 0, 1, 1, 1], [0], [0]>} : vector<2x8x8xbf16>, vector<2x8x8xbf16>, vector<2x8x8xf32> -> vector<2x8x8xf32>
    "tpu.trace_stop"() : () -> ()
    %cst_41 = arith.constant dense<0xFF800000> : vector<2x8xf32>
    %99 = vector.multi_reduction <maximumf>, %98, %cst_41 [2] : vector<2x8x8xf32> to vector<2x8xf32>
    %100 = vector.shape_cast %99 : vector<2x8xf32> to vector<2x8x1xf32>
    %101 = vector.broadcast %100 : vector<2x8x1xf32> to vector<2x8x8xf32>
    %102 = arith.subf %98, %101 : vector<2x8x8xf32>
    %103 = math.exp %102 : vector<2x8x8xf32>
    %cst_42 = arith.constant dense<0.000000e+00> : vector<2x8xf32>
    %104 = vector.multi_reduction <add>, %103, %cst_42 [2] : vector<2x8x8xf32> to vector<2x8xf32>
    %105 = vector.shape_cast %104 : vector<2x8xf32> to vector<2x8x1xf32>
    %106 = tpu.reciprocal %105 {approx = true} : vector<2x8x1xf32> -> vector<2x8x1xf32>
    %107 = vector.broadcast %106 : vector<2x8x1xf32> to vector<2x8x8xf32>
    %108 = arith.mulf %103, %107 : vector<2x8x8xf32>
    %109 = arith.truncf %108 : vector<2x8x8xf32> to vector<2x8x8xbf16>
    "tpu.trace_start"() <{level = 10 : i32, message = "bqk,bkd->bqd"}> : () -> ()
    %cst_43 = arith.constant dense<0.000000e+00> : vector<2x8x8xf32>
    %110 = tpu.matmul %109, %97, %cst_43 {dimension_numbers = #tpu.dot_dimension_numbers<[2], [1], [1], [2], [0, 0, 0, 1, 1, 2], [0], [0]>} : vector<2x8x8xbf16>, vector<2x8x8xbf16>, vector<2x8x8xf32> -> vector<2x8x8xf32>
    "tpu.trace_stop"() : () -> ()
    %111 = vector.shape_cast %110 : vector<2x8x8xf32> to vector<16x8xf32>
    %112 = arith.truncf %111 : vector<16x8xf32> to vector<16x8xbf16>
    %113 = vector.extract_strided_slice %30 {offsets = [24, 0], sizes = [8, 128], strides = [1, 1]} : vector<32x128xbf16> to vector<8x128xbf16>
    %cst_44 = arith.constant dense<0.000000e+00> : vector<16x128xf32>
    %114 = tpu.matmul %112, %113, %cst_44 {dimension_numbers = #tpu.dot_dimension_numbers<[1], [0], [0], [1], [0, 0, 1, 1], [], []>} : vector<16x8xbf16>, vector<8x128xbf16>, vector<16x128xf32> -> vector<16x128xf32>
    %115 = arith.addf %94, %114 : vector<16x128xf32>
    %c0_45 = arith.constant 0 : index
    %c0_46 = arith.constant 0 : index
    %116 = vector.load %arg11[%c0_45, %c0_46] : memref<1x128xf32, #tpu.memory_space<vmem>>, vector<1x128xf32>
    %117 = vector.broadcast %116 : vector<1x128xf32> to vector<16x128xf32>
    %118 = arith.addf %115, %117 : vector<16x128xf32>
    %119 = vector.shape_cast %118 : vector<16x128xf32> to vector<2x8x128xf32>
    %c0_47 = arith.constant 0 : index
    %c0_48 = arith.constant 0 : index
    %c0_49 = arith.constant 0 : index
    %120 = vector.load %arg12[%c0_47, %c0_48, %c0_49] : memref<2x8x128xf32, #tpu.memory_space<vmem>>, vector<2x8x128xf32>
    tpu.vector_store %arg12[%c0_47, %c0_48, %c0_49], %119 {strides = array<i32>} : memref<2x8x128xf32, #tpu.memory_space<vmem>>, vector<2x8x128xf32>,
    return
  }
  func.func @transform_0(%arg0: i32) -> (i32, i32, i32) {
    %c0_i32 = arith.constant 0 : i32
    %c0_i32_0 = arith.constant 0 : i32
    %c0_i32_1 = arith.constant 0 : i32
    return %arg0, %c0_i32, %c0_i32_0 : i32, i32, i32
  }
  func.func @transform_1(%arg0: i32) -> (i32, i32, i32) {
    %c0_i32 = arith.constant 0 : i32
    %c0_i32_0 = arith.constant 0 : i32
    %c0_i32_1 = arith.constant 0 : i32
    return %arg0, %c0_i32, %c0_i32_0 : i32, i32, i32
  }
  func.func @transform_2(%arg0: i32) -> (i32, i32, i32) {
    %c0_i32 = arith.constant 0 : i32
    %c0_i32_0 = arith.constant 0 : i32
    %c0_i32_1 = arith.constant 0 : i32
    return %arg0, %c0_i32, %c0_i32_0 : i32, i32, i32
  }
  func.func @transform_3(%arg0: i32) -> (i32, i32) {
    %c0_i32 = arith.constant 0 : i32
    %c0_i32_0 = arith.constant 0 : i32
    %c0_i32_1 = arith.constant 0 : i32
    return %c0_i32, %c0_i32_0 : i32, i32
  }
  func.func @transform_4(%arg0: i32) -> (i32, i32) {
    %c0_i32 = arith.constant 0 : i32
    %c0_i32_0 = arith.constant 0 : i32
    %c0_i32_1 = arith.constant 0 : i32
    return %c0_i32, %c0_i32_0 : i32, i32
  }
  func.func @transform_5(%arg0: i32) -> (i32, i32) {
    %c0_i32 = arith.constant 0 : i32
    %c0_i32_0 = arith.constant 0 : i32
    %c0_i32_1 = arith.constant 0 : i32
    return %c0_i32, %c0_i32_0 : i32, i32
  }
  func.func @transform_6(%arg0: i32) -> (i32, i32) {
    %c0_i32 = arith.constant 0 : i32
    %c0_i32_0 = arith.constant 0 : i32
    %c0_i32_1 = arith.constant 0 : i32
    return %c0_i32, %c0_i32_0 : i32, i32
  }
  func.func @transform_7(%arg0: i32) -> (i32, i32) {
    %c0_i32 = arith.constant 0 : i32
    %c0_i32_0 = arith.constant 0 : i32
    %c0_i32_1 = arith.constant 0 : i32
    return %c0_i32, %c0_i32_0 : i32, i32
  }
  func.func @transform_8(%arg0: i32) -> (i32, i32) {
    %c0_i32 = arith.constant 0 : i32
    %c0_i32_0 = arith.constant 0 : i32
    %c0_i32_1 = arith.constant 0 : i32
    return %c0_i32, %c0_i32_0 : i32, i32
  }
  func.func @transform_9(%arg0: i32) -> (i32, i32) {
    %c0_i32 = arith.constant 0 : i32
    %c0_i32_0 = arith.constant 0 : i32
    %c0_i32_1 = arith.constant 0 : i32
    return %c0_i32, %c0_i32_0 : i32, i32
  }
  func.func @transform_10(%arg0: i32) -> (i32, i32) {
    %c0_i32 = arith.constant 0 : i32
    %c0_i32_0 = arith.constant 0 : i32
    %c0_i32_1 = arith.constant 0 : i32
    return %c0_i32, %c0_i32_0 : i32, i32
  }
  func.func @transform_11(%arg0: i32) -> (i32, i32, i32) {
    %c0_i32 = arith.constant 0 : i32
    %c0_i32_0 = arith.constant 0 : i32
    %c0_i32_1 = arith.constant 0 : i32
    return %arg0, %c0_i32, %c0_i32_0 : i32, i32, i32
  }
}

</mosaic_0001>

<llo_original>
// kernel: tpu_custom_call.1
$region0: #{tpu_custom_call.1}
  #allocation0 [shape = 'u32[]', space=smem, size = 0x4, offset = 0x4, fixed_abs, tag = 'smem constant byte address 0x4 - core index']
  #allocation1 [shape = 'u32[72,128]{1,0:T(1,128)}', space=vmem, size = 0x9000, scoped, tag = 'internal scratch']
  %s0 = inlined_call_operand.hbm [shape: f32[2,8,32], index: 0, kind: input, shape index: {}]
  %s1 = inlined_call_operand.hbm [shape: f32[2,8,32], index: 1, kind: input, shape index: {}]
  %s2 = inlined_call_operand.hbm [shape: f32[2,8,32], index: 2, kind: input, shape index: {}]
  %s3 = inlined_call_operand.hbm [shape: bf16[32,32], index: 3, kind: input, shape index: {}]
  %s4 = inlined_call_operand.vmem [shape: f32[1,32], index: 4, kind: input, shape index: {}]
  %s5 = inlined_call_operand.hbm [shape: bf16[32,32], index: 5, kind: input, shape index: {}]
  %s6 = inlined_call_operand.vmem [shape: f32[1,32], index: 6, kind: input, shape index: {}]
  %s7 = inlined_call_operand.hbm [shape: bf16[32,32], index: 7, kind: input, shape index: {}]
  %s8 = inlined_call_operand.vmem [shape: f32[1,32], index: 8, kind: input, shape index: {}]
  %s9 = inlined_call_operand.hbm [shape: bf16[32,128], index: 9, kind: input, shape index: {}]
  %s10 = inlined_call_operand.vmem [shape: f32[1,128], index: 10, kind: input, shape index: {}]
  %s11 = inlined_call_operand.hbm [shape: f32[2,8,128], index: 11, kind: output, shape index: {}]
  %s12 = sld [smem:[#allocation0]]
  $region82: #{tpu_custom_call.1} parent=0
    _
  %s14 = ssub.s32 1, %s12
  %s15 = scalar_select 0, %s14, %s12
  $region1: #{tpu_custom_call.1} parent=0
    #allocation2 [shape = 'u8[8192]{0}', space=vmem, size = 0x2000, scoped, tag = 'input window, operand 0, single buffered']
    #allocation3 [shape = 's32[1]{0}', space=sflag, size = 0x4, scoped, tag = 'scoped memory for tpu_custom_call.1']
    #allocation4 [shape = 's32[1]{0}', space=sflag, size = 0x4, scoped, tag = 'scoped memory for tpu_custom_call.1']
    #allocation5 [shape = 'u8[8192]{0}', space=vmem, size = 0x2000, scoped, tag = 'input window, operand 1, single buffered']
    #allocation6 [shape = 's32[1]{0}', space=sflag, size = 0x4, scoped, tag = 'scoped memory for tpu_custom_call.1']
    #allocation7 [shape = 'u8[8192]{0}', space=vmem, size = 0x2000, scoped, tag = 'input window, operand 2, single buffered']
    #allocation8 [shape = 'u8[8192]{0}', space=vmem, size = 0x2000, scoped, tag = 'input window, operand 3, single buffered']
    #allocation9 [shape = 's32[1]{0}', space=sflag, size = 0x4, scoped, tag = 'scoped memory for tpu_custom_call.1']
    #allocation10 [shape = 'u8[8192]{0}', space=vmem, size = 0x2000, scoped, tag = 'input window, operand 5, single buffered']
    #allocation11 [shape = 'u8[8192]{0}', space=vmem, size = 0x2000, scoped, tag = 'input window, operand 7, single buffered']
    #allocation12 [shape = 's32[1]{0}', space=sflag, size = 0x4, scoped, tag = 'scoped memory for tpu_custom_call.1']
    #allocation13 [shape = 'u8[8192]{0}', space=vmem, size = 0x2000, scoped, tag = 'input window, operand 9, single buffered']
    #allocation14 [shape = 'u8[8192]{0}', space=vmem, size = 0x2000, scoped, tag = 'output window, operand 0, single buffered']
    %16 = vsyncpa [#allocation3], 0
    %17 = vsyncpa [#allocation6], 0
    %18 = vsyncpa [#allocation9], 0
    %19 = vsyncpa [#allocation12], 0
    %20 = vsyncpa [#allocation4], 0
    // Predicated region
    $region2: #{tpu_custom_call.1} parent=1 // pred_check
      _
    $region3: #{tpu_custom_call.1} parent=1 // pred_check_branch
      %22 = sbr.rel (0) target = $region5
    $region4: #{tpu_custom_call.1} parent=1 // pred_region
      %24 = vsyncadd [#allocation3], 0
      %s25 = sshll.u32 %s0, 4
      %s26 = int_to_ptr.hbm [resolvable:$true] %s25
      %s27 = sshll.u32 [#allocation2], 4
      %s28 = int_to_ptr.vmem [resolvable:$true] %s27
      %33 = dma.hbm_to_vmem [thread:$0]  %s26, 256, %s28, [#allocation3], 128, 128, 8
    $region5: #{tpu_custom_call.1} parent=1 // pred_fallthru
      _
    // Predicated region
    $region6: #{tpu_custom_call.1} parent=1 // pred_check
      _
    $region7: #{tpu_custom_call.1} parent=1 // pred_check_branch
      %35 = sbr.rel (0) target = $region9
    $region8: #{tpu_custom_call.1} parent=1 // pred_region
      %37 = vsyncadd [#allocation6], 0
      %s38 = sshll.u32 %s1, 4
      %s39 = int_to_ptr.hbm [resolvable:$true] %s38
      %s40 = sshll.u32 [#allocation5], 4
      %s41 = int_to_ptr.vmem [resolvable:$true] %s40
      %46 = dma.hbm_to_vmem [thread:$0]  %s39, 256, %s41, [#allocation6], 128, 128, 8
    $region9: #{tpu_custom_call.1} parent=1 // pred_fallthru
      _
    // Predicated region
    $region10: #{tpu_custom_call.1} parent=1 // pred_check
      _
    $region11: #{tpu_custom_call.1} parent=1 // pred_check_branch
      %48 = sbr.rel (0) target = $region13
    $region12: #{tpu_custom_call.1} parent=1 // pred_region
      %50 = vsyncadd [#allocation6], 0
      %s51 = sshll.u32 %s2, 4
      %s52 = int_to_ptr.hbm [resolvable:$true] %s51
      %s53 = sshll.u32 [#allocation7], 4
      %s54 = int_to_ptr.vmem [resolvable:$true] %s53
      %59 = dma.hbm_to_vmem [thread:$0]  %s52, 256, %s54, [#allocation6], 128, 128, 8
    $region13: #{tpu_custom_call.1} parent=1 // pred_fallthru
      _
    // Predicated region
    $region14: #{tpu_custom_call.1} parent=1 // pred_check
      _
    $region15: #{tpu_custom_call.1} parent=1 // pred_check_branch
      %61 = sbr.rel (0) target = $region17
    $region16: #{tpu_custom_call.1} parent=1 // pred_region
      %63 = vsyncadd [#allocation9], 0
      %s64 = sshll.u32 %s3, 4
      %s65 = int_to_ptr.hbm [resolvable:$true] %s64
      %s66 = sshll.u32 [#allocation8], 4
      %s67 = int_to_ptr.vmem [resolvable:$true] %s66
      %72 = dma.hbm_to_vmem [thread:$0]  %s65, 256, %s67, [#allocation9], 64, 64, 4
    $region17: #{tpu_custom_call.1} parent=1 // pred_fallthru
      _
    // Predicated region
    $region18: #{tpu_custom_call.1} parent=1 // pred_check
      _
    $region19: #{tpu_custom_call.1} parent=1 // pred_check_branch
      %74 = sbr.rel (0) target = $region21
    $region20: #{tpu_custom_call.1} parent=1 // pred_region
      _
    $region21: #{tpu_custom_call.1} parent=1 // pred_fallthru
      _
    // Predicated region
    $region22: #{tpu_custom_call.1} parent=1 // pred_check
      _
    $region23: #{tpu_custom_call.1} parent=1 // pred_check_branch
      %76 = sbr.rel (0) target = $region25
    $region24: #{tpu_custom_call.1} parent=1 // pred_region
      %78 = vsyncadd [#allocation9], 0
      %s79 = sshll.u32 %s5, 4
      %s80 = int_to_ptr.hbm [resolvable:$true] %s79
      %s81 = sshll.u32 [#allocation10], 4
      %s82 = int_to_ptr.vmem [resolvable:$true] %s81
      %87 = dma.hbm_to_vmem [thread:$0]  %s80, 256, %s82, [#allocation9], 64, 64, 4
    $region25: #{tpu_custom_call.1} parent=1 // pred_fallthru
      _
    // Predicated region
    $region26: #{tpu_custom_call.1} parent=1 // pred_check
      _
    $region27: #{tpu_custom_call.1} parent=1 // pred_check_branch
      %89 = sbr.rel (0) target = $region29
    $region28: #{tpu_custom_call.1} parent=1 // pred_region
      _
    $region29: #{tpu_custom_call.1} parent=1 // pred_fallthru
      _
    // Predicated region
    $region30: #{tpu_custom_call.1} parent=1 // pred_check
      _
    $region31: #{tpu_custom_call.1} parent=1 // pred_check_branch
      %91 = sbr.rel (0) target = $region33
    $region32: #{tpu_custom_call.1} parent=1 // pred_region
      %93 = vsyncadd [#allocation12], 0
      %s94 = sshll.u32 %s7, 4
      %s95 = int_to_ptr.hbm [resolvable:$true] %s94
      %s96 = sshll.u32 [#allocation11], 4
      %s97 = int_to_ptr.vmem [resolvable:$true] %s96
      %102 = dma.hbm_to_vmem [thread:$0]  %s95, 256, %s97, [#allocation12], 64, 64, 4
    $region33: #{tpu_custom_call.1} parent=1 // pred_fallthru
      _
    // Predicated region
    $region34: #{tpu_custom_call.1} parent=1 // pred_check
      _
    $region35: #{tpu_custom_call.1} parent=1 // pred_check_branch
      %104 = sbr.rel (0) target = $region37
    $region36: #{tpu_custom_call.1} parent=1 // pred_region
      _
    $region37: #{tpu_custom_call.1} parent=1 // pred_fallthru
      _
    // Predicated region
    $region38: #{tpu_custom_call.1} parent=1 // pred_check
      _
    $region39: #{tpu_custom_call.1} parent=1 // pred_check_branch
      %106 = sbr.rel (0) target = $region41
    $region40: #{tpu_custom_call.1} parent=1 // pred_region
      %108 = vsyncadd [#allocation12], 0
      %s109 = sshll.u32 %s9, 4
      %s110 = int_to_ptr.hbm [resolvable:$true] %s109
      %s111 = sshll.u32 [#allocation13], 4
      %s112 = int_to_ptr.vmem [resolvable:$true] %s111
      %117 = dma.hbm_to_vmem [thread:$0]  %s110, 256, %s112, [#allocation12], 64, 64, 4
    $region41: #{tpu_custom_call.1} parent=1 // pred_fallthru
      _
    // Predicated region
    $region42: #{tpu_custom_call.1} parent=1 // pred_check
      _
    $region43: #{tpu_custom_call.1} parent=1 // pred_check_branch
      %119 = sbr.rel (0) target = $region45
    $region44: #{tpu_custom_call.1} parent=1 // pred_region
      _
    $region45: #{tpu_custom_call.1} parent=1 // pred_fallthru
      _
    // Predicated region
    $region46: #{tpu_custom_call.1} parent=1 // pred_check
      _
    $region47: #{tpu_custom_call.1} parent=1 // pred_check_branch
      %121 = sbr.rel (0) target = $region49
    $region48: #{tpu_custom_call.1} parent=1 // pred_region
      %123 = dma.done [#allocation3], 256
    $region49: #{tpu_custom_call.1} parent=1 // pred_fallthru
      _
    // Predicated region
    $region50: #{tpu_custom_call.1} parent=1 // pred_check
      _
    $region51: #{tpu_custom_call.1} parent=1 // pred_check_branch
      %125 = sbr.rel (0) target = $region53
    $region52: #{tpu_custom_call.1} parent=1 // pred_region
      %127 = dma.done [#allocation6], 256
    $region53: #{tpu_custom_call.1} parent=1 // pred_fallthru
      _
    // Predicated region
    $region54: #{tpu_custom_call.1} parent=1 // pred_check
      _
    $region55: #{tpu_custom_call.1} parent=1 // pred_check_branch
      %129 = sbr.rel (0) target = $region57
    $region56: #{tpu_custom_call.1} parent=1 // pred_region
      %131 = dma.done [#allocation6], 256
    $region57: #{tpu_custom_call.1} parent=1 // pred_fallthru
      _
    // Predicated region
    $region58: #{tpu_custom_call.1} parent=1 // pred_check
      _
    $region59: #{tpu_custom_call.1} parent=1 // pred_check_branch
      %133 = sbr.rel (0) target = $region61
    $region60: #{tpu_custom_call.1} parent=1 // pred_region
      %135 = dma.done [#allocation9], 256
    $region61: #{tpu_custom_call.1} parent=1 // pred_fallthru
      _
    // Predicated region
    $region62: #{tpu_custom_call.1} parent=1 // pred_check
      _
    $region63: #{tpu_custom_call.1} parent=1 // pred_check_branch
      %137 = sbr.rel (0) target = $region65
    $region64: #{tpu_custom_call.1} parent=1 // pred_region
      %139 = dma.done [#allocation9], 256
    $region65: #{tpu_custom_call.1} parent=1 // pred_fallthru
      _
    // Predicated region
    $region66: #{tpu_custom_call.1} parent=1 // pred_check
      _
    $region67: #{tpu_custom_call.1} parent=1 // pred_check_branch
      %141 = sbr.rel (0) target = $region69
    $region68: #{tpu_custom_call.1} parent=1 // pred_region
      %143 = dma.done [#allocation12], 256
    $region69: #{tpu_custom_call.1} parent=1 // pred_fallthru
      _
    // Predicated region
    $region70: #{tpu_custom_call.1} parent=1 // pred_check
      _
    $region71: #{tpu_custom_call.1} parent=1 // pred_check_branch
      %145 = sbr.rel (0) target = $region73
    $region72: #{tpu_custom_call.1} parent=1 // pred_region
      %147 = dma.done [#allocation12], 256
    $region73: #{tpu_custom_call.1} parent=1 // pred_fallthru
      _
    %v149 = vld [vmem:[#allocation2] sm:$0xff]
    %v150 = vld [vmem:[#allocation2 + $0x8] sm:$0xff]
    %v151 = vpack.c.bf16 %v150, %v149
    %v152 = vld [vmem:[#allocation5] sm:$0xff]
    %v153 = vld [vmem:[#allocation5 + $0x8] sm:$0xff]
    %v154 = vpack.c.bf16 %v153, %v152
    %v155 = vld [vmem:[#allocation7] sm:$0xff]
    %v156 = vld [vmem:[#allocation7 + $0x8] sm:$0xff]
    %v157 = vpack.c.bf16 %v156, %v155
    %v158 = vld [vmem:[#allocation8] sm:$0xf]
    %v159 = vld [vmem:[#allocation8 + $0x4] sm:$0xf]
    %v160 = vld [vmem:[#allocation8 + $0x8] sm:$0xf]
    %v161 = vld [vmem:[#allocation8 + $0xc] sm:$0xf]
    %v162 = vld [vmem:[%s4] sm:$0x1]
    %v164 = vperm.slane %v162, 0
    %v170 = vunpack.c.l.b16 %v158
    %v171 = vunpack.c.l.b16 %v159
    %v172 = vunpack.c.l.b16 %v160
    %v173 = vunpack.c.l.b16 %v161
    %v174 = vpack.c.b16 %v171, %v170
    %v175 = vpack.c.b16 %v173, %v172
    %vm178 = vcmask 261120
    %v180 = vsel %vm178, %v151, 0
    %182 = vmatpush.bf16.msra.mxu0 0
    %183 = vmatpush.bf16.msra.mxu0 0
    %184 = vmatpush.bf16.msra.mxu0 0
    %185 = vmatpush.bf16.msra.mxu0 0
    %186 = vmatpush.bf16.msra.mxu0 0
    %187 = vmatpush.bf16.msra.mxu0 0
    %188 = vmatpush.bf16.msra.mxu0 %v175
    %189 = vmatpush.bf16.msra.mxu0 %v174
    %190 = vmatmul.bf16.gmra.mxu0 %v180
    %v191 = vpop.f32.mrf.mxu0
    %v192 = vadd.f32 %v164, %v191
    %v193 = vpop.f32.mrf.mxu0
    %v194 = vadd.f32 %v164, %v193
    %195 = vdwg.mxu0
    %v196 = vld [vmem:[#allocation10] sm:$0xf]
    %v197 = vld [vmem:[#allocation10 + $0x4] sm:$0xf]
    %v198 = vld [vmem:[#allocation10 + $0x8] sm:$0xf]
    %v199 = vld [vmem:[#allocation10 + $0xc] sm:$0xf]
    %v200 = vld [vmem:[%s6] sm:$0x1]
    %v202 = vperm.slane %v200, 0
    %v208 = vunpack.c.l.b16 %v196
    %v209 = vunpack.c.l.b16 %v197
    %v210 = vunpack.c.l.b16 %v198
    %v211 = vunpack.c.l.b16 %v199
    %v212 = vpack.c.b16 %v209, %v208
    %v213 = vpack.c.b16 %v211, %v210
    %v217 = vsel %vm178, %v154, 0
    %219 = vmatpush.bf16.msra.mxu0 0
    %220 = vmatpush.bf16.msra.mxu0 0
    %221 = vmatpush.bf16.msra.mxu0 0
    %222 = vmatpush.bf16.msra.mxu0 0
    %223 = vmatpush.bf16.msra.mxu0 0
    %224 = vmatpush.bf16.msra.mxu0 0
    %225 = vmatpush.bf16.msra.mxu0 %v213
    %226 = vmatpush.bf16.msra.mxu0 %v212
    %227 = vmatmul.bf16.gmra.mxu0 %v217
    %v228 = vpop.f32.mrf.mxu0
    %v229 = vadd.f32 %v202, %v228
    %v230 = vpop.f32.mrf.mxu0
    %v231 = vadd.f32 %v202, %v230
    %232 = vdwg.mxu0
    %v233 = vld [vmem:[#allocation11] sm:$0xf]
    %v234 = vld [vmem:[#allocation11 + $0x4] sm:$0xf]
    %v235 = vld [vmem:[#allocation11 + $0x8] sm:$0xf]
    %v236 = vld [vmem:[#allocation11 + $0xc] sm:$0xf]
    %v237 = vld [vmem:[%s8] sm:$0x1]
    %v239 = vperm.slane %v237, 0
    %v245 = vunpack.c.l.b16 %v233
    %v246 = vunpack.c.l.b16 %v234
    %v247 = vunpack.c.l.b16 %v235
    %v248 = vunpack.c.l.b16 %v236
    %v249 = vpack.c.b16 %v246, %v245
    %v250 = vpack.c.b16 %v248, %v247
    %v254 = vsel %vm178, %v157, 0
    %256 = vmatpush.bf16.msra.mxu0 0
    %257 = vmatpush.bf16.msra.mxu0 0
    %258 = vmatpush.bf16.msra.mxu0 0
    %259 = vmatpush.bf16.msra.mxu0 0
    %260 = vmatpush.bf16.msra.mxu0 0
    %261 = vmatpush.bf16.msra.mxu0 0
    %262 = vmatpush.bf16.msra.mxu0 %v250
    %263 = vmatpush.bf16.msra.mxu0 %v249
    %264 = vmatmul.bf16.gmra.mxu0 %v254
    %v265 = vpop.f32.mrf.mxu0
    %v266 = vadd.f32 %v239, %v265
    %v267 = vpop.f32.mrf.mxu0
    %v268 = vadd.f32 %v239, %v267
    %269 = vdwg.mxu0
    %v270 = vpack.c.bf16 %v192, %v192
    %v271 = vpack.c.bf16 %v194, %v194
    %v272 = vpack.c.bf16 %v229, %v229
    %v273 = vpack.c.bf16 %v231, %v231
    %v274 = vpack.c.bf16 %v266, %v266
    %v275 = vpack.c.bf16 %v268, %v268
    %v276 = vld [vmem:[#allocation13] sm:$0xf]
    %v277 = vld [vmem:[#allocation13 + $0x4] sm:$0xf]
    %v278 = vld [vmem:[#allocation13 + $0x8] sm:$0xf]
    %v279 = vld [vmem:[#allocation13 + $0xc] sm:$0xf]
    %vm280 = vcmask 64512
    %v282 = vsel %vm280, %v270, 0
    %v285 = vsel %vm280, %v272, 0
    %287 = vmatpush.bf16.xpose.msra.mxu0 0
    %288 = vmatpush.bf16.xpose.msra.mxu0 0
    %289 = vmatpush.bf16.xpose.msra.mxu0 0
    %290 = vmatpush.bf16.xpose.msra.mxu0 0
    %291 = vmatpush.bf16.xpose.msra.mxu0 0
    %292 = vmatpush.bf16.xpose.msra.mxu0 0
    %293 = vmatpush.bf16.xpose.msra.mxu0 0
    %294 = vmatpush.bf16.xpose.msra.mxu0 %v285
    %295 = vmatmul.bf16.gmra.mxu0 %v282
    %v296 = vpop.f32.mrf.mxu0
    %v297 = vadd.f32 0.0, %v296
    %v298 = vpop.f32.mrf.mxu0
    %299 = vdwg.mxu0
    %v301 = vsel %vm280, %v271, 0
    %v304 = vsel %vm280, %v273, 0
    %306 = vmatpush.bf16.xpose.msra.mxu0 0
    %307 = vmatpush.bf16.xpose.msra.mxu0 0
    %308 = vmatpush.bf16.xpose.msra.mxu0 0
    %309 = vmatpush.bf16.xpose.msra.mxu0 0
    %310 = vmatpush.bf16.xpose.msra.mxu0 0
    %311 = vmatpush.bf16.xpose.msra.mxu0 0
    %312 = vmatpush.bf16.xpose.msra.mxu0 0
    %313 = vmatpush.bf16.xpose.msra.mxu0 %v304
    %314 = vmatmul.bf16.gmra.mxu0 %v301
    %v315 = vpop.f32.mrf.mxu0
    %v316 = vadd.f32 0.0, %v315
    %v317 = vpop.f32.mrf.mxu0
    %318 = vdwg.mxu0
    %v319 = vsel %vm280, %v297, -inf
    %320 = vmax.xlane.f32.xlu0 %v319
    %v321 = vpop.xlane.xlu0 %320
    %v322 = vsel %vm280, %v316, -inf
    %323 = vmax.xlane.f32.xlu0 %v322
    %v324 = vpop.xlane.xlu0 %323
    %v325 = vsub.f32 %v297, %v321
    %v326 = vsub.f32 %v316, %v324
    %v327 = vmul.f32 %v325, 1.442695
    %v328 = vpow.pop %v327
    %v329 = vmul.f32 %v326, 1.442695
    %v330 = vpow.pop %v329
    %v331 = vsel %vm280, %v328, 0.0
    %332 = vadd.xlane.f32.xlu0 %v331
    %v333 = vpop.xlane.xlu0 %332
    %v334 = vsel %vm280, %v330, 0.0
    %335 = vadd.xlane.f32.xlu0 %v334
    %v336 = vpop.xlane.xlu0 %335
    %v337 = vrcp.pop %v333
    %v338 = vrcp.pop %v336
    %v339 = vmul.f32 %v328, %v337
    %v340 = vmul.f32 %v330, %v338
    %v341 = vpack.c.bf16 %v339, %v339
    %v342 = vpack.c.bf16 %v340, %v340
    %v344 = vsel %vm280, %v341, 0
    %vm346 = vcmask 1043456
    %v348 = vsel %vm346, %v274, 0
    %350 = vmatpush.bf16.msra.mxu0 0
    %351 = vmatpush.bf16.msra.mxu0 0
    %352 = vmatpush.bf16.msra.mxu0 0
    %353 = vmatpush.bf16.msra.mxu0 0
    %354 = vmatpush.bf16.msra.mxu0 0
    %355 = vmatpush.bf16.msra.mxu0 0
    %356 = vmatpush.bf16.msra.mxu0 0
    %357 = vmatpush.bf16.msra.mxu0 %v348
    %358 = vmatmul.bf16.gmra.mxu0 %v344
    %v359 = vpop.f32.mrf.mxu0
    %v360 = vadd.f32 0.0, %v359
    %v361 = vpop.f32.mrf.mxu0
    %362 = vdwg.mxu0
    %v364 = vsel %vm280, %v342, 0
    %v367 = vsel %vm346, %v275, 0
    %369 = vmatpush.bf16.msra.mxu0 0
    %370 = vmatpush.bf16.msra.mxu0 0
    %371 = vmatpush.bf16.msra.mxu0 0
    %372 = vmatpush.bf16.msra.mxu0 0
    %373 = vmatpush.bf16.msra.mxu0 0
    %374 = vmatpush.bf16.msra.mxu0 0
    %375 = vmatpush.bf16.msra.mxu0 0
    %376 = vmatpush.bf16.msra.mxu0 %v367
    %377 = vmatmul.bf16.gmra.mxu0 %v364
    %v378 = vpop.f32.mrf.mxu0
    %v379 = vadd.f32 0.0, %v378
    %v380 = vpop.f32.mrf.mxu0
    %381 = vdwg.mxu0
    %v382 = vpack.c.bf16 %v379, %v360
    %v384 = vunpack.c.l.b16 %v270
    %v385 = vpack.c.b16 %v384, %v384
    %386 = vrot.lane.b32.xlu0 %v385, 120
    %v387 = vpop.permute.xlu0 %386
    %v389 = vunpack.c.l.b16 %v272
    %v390 = vpack.c.b16 %v389, %v389
    %391 = vrot.lane.b32.xlu0 %v390, 120
    %v392 = vpop.permute.xlu0 %391
    %v394 = vsel %vm280, %v387, 0
    %v397 = vsel %vm280, %v392, 0
    %399 = vmatpush.bf16.xpose.msra.mxu0 0
    %400 = vmatpush.bf16.xpose.msra.mxu0 0
    %401 = vmatpush.bf16.xpose.msra.mxu0 0
    %402 = vmatpush.bf16.xpose.msra.mxu0 0
    %403 = vmatpush.bf16.xpose.msra.mxu0 0
    %404 = vmatpush.bf16.xpose.msra.mxu0 0
    %405 = vmatpush.bf16.xpose.msra.mxu0 0
    %406 = vmatpush.bf16.xpose.msra.mxu0 %v397
    %407 = vmatmul.bf16.gmra.mxu0 %v394
    %v408 = vpop.f32.mrf.mxu0
    %v409 = vadd.f32 0.0, %v408
    %v410 = vpop.f32.mrf.mxu0
    %411 = vdwg.mxu0
    %v413 = vunpack.c.l.b16 %v271
    %v414 = vpack.c.b16 %v413, %v413
    %415 = vrot.lane.b32.xlu0 %v414, 120
    %v416 = vpop.permute.xlu0 %415
    %v418 = vunpack.c.l.b16 %v273
    %v419 = vpack.c.b16 %v418, %v418
    %420 = vrot.lane.b32.xlu0 %v419, 120
    %v421 = vpop.permute.xlu0 %420
    %v423 = vsel %vm280, %v416, 0
    %v426 = vsel %vm280, %v421, 0
    %428 = vmatpush.bf16.xpose.msra.mxu0 0
    %429 = vmatpush.bf16.xpose.msra.mxu0 0
    %430 = vmatpush.bf16.xpose.msra.mxu0 0
    %431 = vmatpush.bf16.xpose.msra.mxu0 0
    %432 = vmatpush.bf16.xpose.msra.mxu0 0
    %433 = vmatpush.bf16.xpose.msra.mxu0 0
    %434 = vmatpush.bf16.xpose.msra.mxu0 0
    %435 = vmatpush.bf16.xpose.msra.mxu0 %v426
    %436 = vmatmul.bf16.gmra.mxu0 %v423
    %v437 = vpop.f32.mrf.mxu0
    %v438 = vadd.f32 0.0, %v437
    %v439 = vpop.f32.mrf.mxu0
    %440 = vdwg.mxu0
    %v441 = vsel %vm280, %v409, -inf
    %442 = vmax.xlane.f32.xlu0 %v441
    %v443 = vpop.xlane.xlu0 %442
    %v444 = vsel %vm280, %v438, -inf
    %445 = vmax.xlane.f32.xlu0 %v444
    %v446 = vpop.xlane.xlu0 %445
    %v447 = vsub.f32 %v409, %v443
    %v448 = vsub.f32 %v438, %v446
    %v449 = vmul.f32 %v447, 1.442695
    %v450 = vpow.pop %v449
    %v451 = vmul.f32 %v448, 1.442695
    %v452 = vpow.pop %v451
    %v453 = vsel %vm280, %v450, 0.0
    %454 = vadd.xlane.f32.xlu0 %v453
    %v455 = vpop.xlane.xlu0 %454
    %v456 = vsel %vm280, %v452, 0.0
    %457 = vadd.xlane.f32.xlu0 %v456
    %v458 = vpop.xlane.xlu0 %457
    %v459 = vrcp.pop %v455
    %v460 = vrcp.pop %v458
    %v461 = vmul.f32 %v450, %v459
    %v462 = vmul.f32 %v452, %v460
    %v463 = vpack.c.bf16 %v461, %v461
    %v464 = vpack.c.bf16 %v462, %v462
    %v466 = vunpack.c.l.b16 %v274
    %v467 = vpack.c.b16 %v466, %v466
    %468 = vrot.lane.b32.xlu0 %v467, 120
    %v469 = vpop.permute.xlu0 %468
    %v471 = vsel %vm280, %v463, 0
    %v474 = vsel %vm346, %v469, 0
    %476 = vmatpush.bf16.msra.mxu0 0
    %477 = vmatpush.bf16.msra.mxu0 0
    %478 = vmatpush.bf16.msra.mxu0 0
    %479 = vmatpush.bf16.msra.mxu0 0
    %480 = vmatpush.bf16.msra.mxu0 0
    %481 = vmatpush.bf16.msra.mxu0 0
    %482 = vmatpush.bf16.msra.mxu0 0
    %483 = vmatpush.bf16.msra.mxu0 %v474
    %484 = vmatmul.bf16.gmra.mxu0 %v471
    %v485 = vpop.f32.mrf.mxu0
    %v486 = vadd.f32 0.0, %v485
    %v487 = vpop.f32.mrf.mxu0
    %488 = vdwg.mxu0
    %v490 = vunpack.c.l.b16 %v275
    %v491 = vpack.c.b16 %v490, %v490
    %492 = vrot.lane.b32.xlu0 %v491, 120
    %v493 = vpop.permute.xlu0 %492
    %v495 = vsel %vm280, %v464, 0
    %v498 = vsel %vm346, %v493, 0
    %500 = vmatpush.bf16.msra.mxu0 0
    %501 = vmatpush.bf16.msra.mxu0 0
    %502 = vmatpush.bf16.msra.mxu0 0
    %503 = vmatpush.bf16.msra.mxu0 0
    %504 = vmatpush.bf16.msra.mxu0 0
    %505 = vmatpush.bf16.msra.mxu0 0
    %506 = vmatpush.bf16.msra.mxu0 0
    %507 = vmatpush.bf16.msra.mxu0 %v498
    %508 = vmatmul.bf16.gmra.mxu0 %v495
    %v509 = vpop.f32.mrf.mxu0
    %v510 = vadd.f32 0.0, %v509
    %v511 = vpop.f32.mrf.mxu0
    %512 = vdwg.mxu0
    %v513 = vpack.c.bf16 %v510, %v486
    %v515 = vsel %vm280, %v513, 0
    %v518 = vsel %vm346, %v277, 0
    %520 = vmatpush.bf16.msra.mxu0 0
    %521 = vmatpush.bf16.msra.mxu0 0
    %522 = vmatpush.bf16.msra.mxu0 0
    %523 = vmatpush.bf16.msra.mxu0 0
    %524 = vmatpush.bf16.msra.mxu0 0
    %525 = vmatpush.bf16.msra.mxu0 0
    %526 = vmatpush.bf16.msra.mxu0 0
    %527 = vmatpush.bf16.msra.mxu0 %v518
    %528 = vmatmul.bf16.gmra.mxu0 %v515
    %v529 = vpop.f32.mrf.mxu0
    %v530 = vadd.f32 0.0, %v529
    %v531 = vpop.f32.mrf.mxu0
    %v532 = vadd.f32 0.0, %v531
    %533 = vdwg.mxu0
    %v535 = vsel %vm280, %v382, 0
    %v538 = vsel %vm346, %v276, 0
    %540 = vmatpush.bf16.msra.mxu0 0
    %541 = vmatpush.bf16.msra.mxu0 0
    %542 = vmatpush.bf16.msra.mxu0 0
    %543 = vmatpush.bf16.msra.mxu0 0
    %544 = vmatpush.bf16.msra.mxu0 0
    %545 = vmatpush.bf16.msra.mxu0 0
    %546 = vmatpush.bf16.msra.mxu0 0
    %547 = vmatpush.bf16.msra.mxu0 %v538
    %548 = vmatmul.bf16.gmra.mxu0 %v535
    %v549 = vpop.f32.mrf.mxu0
    %v550 = vadd.f32 %v530, %v549
    %v551 = vpop.f32.mrf.mxu0
    %v552 = vadd.f32 %v532, %v551
    %553 = vdwg.mxu0
    %554 = vrot.lane.b32.xlu0 %v385, 112
    %v555 = vpop.permute.xlu0 %554
    %556 = vrot.lane.b32.xlu0 %v390, 112
    %v557 = vpop.permute.xlu0 %556
    %v559 = vsel %vm280, %v555, 0
    %v562 = vsel %vm280, %v557, 0
    %564 = vmatpush.bf16.xpose.msra.mxu0 0
    %565 = vmatpush.bf16.xpose.msra.mxu0 0
    %566 = vmatpush.bf16.xpose.msra.mxu0 0
    %567 = vmatpush.bf16.xpose.msra.mxu0 0
    %568 = vmatpush.bf16.xpose.msra.mxu0 0
    %569 = vmatpush.bf16.xpose.msra.mxu0 0
    %570 = vmatpush.bf16.xpose.msra.mxu0 0
    %571 = vmatpush.bf16.xpose.msra.mxu0 %v562
    %572 = vmatmul.bf16.gmra.mxu0 %v559
    %v573 = vpop.f32.mrf.mxu0
    %v574 = vadd.f32 0.0, %v573
    %v575 = vpop.f32.mrf.mxu0
    %576 = vdwg.mxu0
    %577 = vrot.lane.b32.xlu0 %v414, 112
    %v578 = vpop.permute.xlu0 %577
    %579 = vrot.lane.b32.xlu0 %v419, 112
    %v580 = vpop.permute.xlu0 %579
    %v582 = vsel %vm280, %v578, 0
    %v585 = vsel %vm280, %v580, 0
    %587 = vmatpush.bf16.xpose.msra.mxu0 0
    %588 = vmatpush.bf16.xpose.msra.mxu0 0
    %589 = vmatpush.bf16.xpose.msra.mxu0 0
    %590 = vmatpush.bf16.xpose.msra.mxu0 0
    %591 = vmatpush.bf16.xpose.msra.mxu0 0
    %592 = vmatpush.bf16.xpose.msra.mxu0 0
    %593 = vmatpush.bf16.xpose.msra.mxu0 0
    %594 = vmatpush.bf16.xpose.msra.mxu0 %v585
    %595 = vmatmul.bf16.gmra.mxu0 %v582
    %v596 = vpop.f32.mrf.mxu0
    %v597 = vadd.f32 0.0, %v596
    %v598 = vpop.f32.mrf.mxu0
    %599 = vdwg.mxu0
    %v600 = vsel %vm280, %v574, -inf
    %601 = vmax.xlane.f32.xlu0 %v600
    %v602 = vpop.xlane.xlu0 %601
    %v603 = vsel %vm280, %v597, -inf
    %604 = vmax.xlane.f32.xlu0 %v603
    %v605 = vpop.xlane.xlu0 %604
    %v606 = vsub.f32 %v574, %v602
    %v607 = vsub.f32 %v597, %v605
    %v608 = vmul.f32 %v606, 1.442695
    %v609 = vpow.pop %v608
    %v610 = vmul.f32 %v607, 1.442695
    %v611 = vpow.pop %v610
    %v612 = vsel %vm280, %v609, 0.0
    %613 = vadd.xlane.f32.xlu0 %v612
    %v614 = vpop.xlane.xlu0 %613
    %v615 = vsel %vm280, %v611, 0.0
    %616 = vadd.xlane.f32.xlu0 %v615
    %v617 = vpop.xlane.xlu0 %616
    %v618 = vrcp.pop %v614
    %v619 = vrcp.pop %v617
    %v620 = vmul.f32 %v609, %v618
    %v621 = vmul.f32 %v611, %v619
    %v622 = vpack.c.bf16 %v620, %v620
    %v623 = vpack.c.bf16 %v621, %v621
    %624 = vrot.lane.b32.xlu0 %v467, 112
    %v625 = vpop.permute.xlu0 %624
    %v627 = vsel %vm280, %v622, 0
    %v630 = vsel %vm346, %v625, 0
    %632 = vmatpush.bf16.msra.mxu0 0
    %633 = vmatpush.bf16.msra.mxu0 0
    %634 = vmatpush.bf16.msra.mxu0 0
    %635 = vmatpush.bf16.msra.mxu0 0
    %636 = vmatpush.bf16.msra.mxu0 0
    %637 = vmatpush.bf16.msra.mxu0 0
    %638 = vmatpush.bf16.msra.mxu0 0
    %639 = vmatpush.bf16.msra.mxu0 %v630
    %640 = vmatmul.bf16.gmra.mxu0 %v627
    %v641 = vpop.f32.mrf.mxu0
    %v642 = vadd.f32 0.0, %v641
    %v643 = vpop.f32.mrf.mxu0
    %644 = vdwg.mxu0
    %645 = vrot.lane.b32.xlu0 %v491, 112
    %v646 = vpop.permute.xlu0 %645
    %v648 = vsel %vm280, %v623, 0
    %v651 = vsel %vm346, %v646, 0
    %653 = vmatpush.bf16.msra.mxu0 0
    %654 = vmatpush.bf16.msra.mxu0 0
    %655 = vmatpush.bf16.msra.mxu0 0
    %656 = vmatpush.bf16.msra.mxu0 0
    %657 = vmatpush.bf16.msra.mxu0 0
    %658 = vmatpush.bf16.msra.mxu0 0
    %659 = vmatpush.bf16.msra.mxu0 0
    %660 = vmatpush.bf16.msra.mxu0 %v651
    %661 = vmatmul.bf16.gmra.mxu0 %v648
    %v662 = vpop.f32.mrf.mxu0
    %v663 = vadd.f32 0.0, %v662
    %v664 = vpop.f32.mrf.mxu0
    %665 = vdwg.mxu0
    %v666 = vpack.c.bf16 %v663, %v642
    %v668 = vsel %vm280, %v666, 0
    %v671 = vsel %vm346, %v278, 0
    %673 = vmatpush.bf16.msra.mxu0 0
    %674 = vmatpush.bf16.msra.mxu0 0
    %675 = vmatpush.bf16.msra.mxu0 0
    %676 = vmatpush.bf16.msra.mxu0 0
    %677 = vmatpush.bf16.msra.mxu0 0
    %678 = vmatpush.bf16.msra.mxu0 0
    %679 = vmatpush.bf16.msra.mxu0 0
    %680 = vmatpush.bf16.msra.mxu0 %v671
    %681 = vmatmul.bf16.gmra.mxu0 %v668
    %v682 = vpop.f32.mrf.mxu0
    %v683 = vadd.f32 0.0, %v682
    %v684 = vpop.f32.mrf.mxu0
    %v685 = vadd.f32 0.0, %v684
    %686 = vdwg.mxu0
    %v687 = vadd.f32 %v550, %v683
    %v688 = vadd.f32 %v552, %v685
    %689 = vrot.lane.b32.xlu0 %v385, 104
    %v690 = vpop.permute.xlu0 %689
    %691 = vrot.lane.b32.xlu0 %v390, 104
    %v692 = vpop.permute.xlu0 %691
    %v694 = vsel %vm280, %v690, 0
    %v697 = vsel %vm280, %v692, 0
    %699 = vmatpush.bf16.xpose.msra.mxu0 0
    %700 = vmatpush.bf16.xpose.msra.mxu0 0
    %701 = vmatpush.bf16.xpose.msra.mxu0 0
    %702 = vmatpush.bf16.xpose.msra.mxu0 0
    %703 = vmatpush.bf16.xpose.msra.mxu0 0
    %704 = vmatpush.bf16.xpose.msra.mxu0 0
    %705 = vmatpush.bf16.xpose.msra.mxu0 0
    %706 = vmatpush.bf16.xpose.msra.mxu0 %v697
    %707 = vmatmul.bf16.gmra.mxu0 %v694
    %v708 = vpop.f32.mrf.mxu0
    %v709 = vadd.f32 0.0, %v708
    %v710 = vpop.f32.mrf.mxu0
    %711 = vdwg.mxu0
    %712 = vrot.lane.b32.xlu0 %v414, 104
    %v713 = vpop.permute.xlu0 %712
    %714 = vrot.lane.b32.xlu0 %v419, 104
    %v715 = vpop.permute.xlu0 %714
    %v717 = vsel %vm280, %v713, 0
    %v720 = vsel %vm280, %v715, 0
    %722 = vmatpush.bf16.xpose.msra.mxu0 0
    %723 = vmatpush.bf16.xpose.msra.mxu0 0
    %724 = vmatpush.bf16.xpose.msra.mxu0 0
    %725 = vmatpush.bf16.xpose.msra.mxu0 0
    %726 = vmatpush.bf16.xpose.msra.mxu0 0
    %727 = vmatpush.bf16.xpose.msra.mxu0 0
    %728 = vmatpush.bf16.xpose.msra.mxu0 0
    %729 = vmatpush.bf16.xpose.msra.mxu0 %v720
    %730 = vmatmul.bf16.gmra.mxu0 %v717
    %v731 = vpop.f32.mrf.mxu0
    %v732 = vadd.f32 0.0, %v731
    %v733 = vpop.f32.mrf.mxu0
    %734 = vdwg.mxu0
    %v735 = vsel %vm280, %v709, -inf
    %736 = vmax.xlane.f32.xlu0 %v735
    %v737 = vpop.xlane.xlu0 %736
    %v738 = vsel %vm280, %v732, -inf
    %739 = vmax.xlane.f32.xlu0 %v738
    %v740 = vpop.xlane.xlu0 %739
    %v741 = vsub.f32 %v709, %v737
    %v742 = vsub.f32 %v732, %v740
    %v743 = vmul.f32 %v741, 1.442695
    %v744 = vpow.pop %v743
    %v745 = vmul.f32 %v742, 1.442695
    %v746 = vpow.pop %v745
    %v747 = vsel %vm280, %v744, 0.0
    %748 = vadd.xlane.f32.xlu0 %v747
    %v749 = vpop.xlane.xlu0 %748
    %v750 = vsel %vm280, %v746, 0.0
    %751 = vadd.xlane.f32.xlu0 %v750
    %v752 = vpop.xlane.xlu0 %751
    %v753 = vrcp.pop %v749
    %v754 = vrcp.pop %v752
    %v755 = vmul.f32 %v744, %v753
    %v756 = vmul.f32 %v746, %v754
    %v757 = vpack.c.bf16 %v755, %v755
    %v758 = vpack.c.bf16 %v756, %v756
    %759 = vrot.lane.b32.xlu0 %v467, 104
    %v760 = vpop.permute.xlu0 %759
    %v762 = vsel %vm280, %v757, 0
    %v765 = vsel %vm346, %v760, 0
    %767 = vmatpush.bf16.msra.mxu0 0
    %768 = vmatpush.bf16.msra.mxu0 0
    %769 = vmatpush.bf16.msra.mxu0 0
    %770 = vmatpush.bf16.msra.mxu0 0
    %771 = vmatpush.bf16.msra.mxu0 0
    %772 = vmatpush.bf16.msra.mxu0 0
    %773 = vmatpush.bf16.msra.mxu0 0
    %774 = vmatpush.bf16.msra.mxu0 %v765
    %775 = vmatmul.bf16.gmra.mxu0 %v762
    %v776 = vpop.f32.mrf.mxu0
    %v777 = vadd.f32 0.0, %v776
    %v778 = vpop.f32.mrf.mxu0
    %779 = vdwg.mxu0
    %780 = vrot.lane.b32.xlu0 %v491, 104
    %v781 = vpop.permute.xlu0 %780
    %v783 = vsel %vm280, %v758, 0
    %v786 = vsel %vm346, %v781, 0
    %788 = vmatpush.bf16.msra.mxu0 0
    %789 = vmatpush.bf16.msra.mxu0 0
    %790 = vmatpush.bf16.msra.mxu0 0
    %791 = vmatpush.bf16.msra.mxu0 0
    %792 = vmatpush.bf16.msra.mxu0 0
    %793 = vmatpush.bf16.msra.mxu0 0
    %794 = vmatpush.bf16.msra.mxu0 0
    %795 = vmatpush.bf16.msra.mxu0 %v786
    %796 = vmatmul.bf16.gmra.mxu0 %v783
    %v797 = vpop.f32.mrf.mxu0
    %v798 = vadd.f32 0.0, %v797
    %v799 = vpop.f32.mrf.mxu0
    %800 = vdwg.mxu0
    %v801 = vpack.c.bf16 %v798, %v777
    %v803 = vsel %vm280, %v801, 0
    %v806 = vsel %vm346, %v279, 0
    %808 = vmatpush.bf16.msra.mxu0 0
    %809 = vmatpush.bf16.msra.mxu0 0
    %810 = vmatpush.bf16.msra.mxu0 0
    %811 = vmatpush.bf16.msra.mxu0 0
    %812 = vmatpush.bf16.msra.mxu0 0
    %813 = vmatpush.bf16.msra.mxu0 0
    %814 = vmatpush.bf16.msra.mxu0 0
    %815 = vmatpush.bf16.msra.mxu0 %v806
    %816 = vmatmul.bf16.gmra.mxu0 %v803
    %v817 = vpop.f32.mrf.mxu0
    %v818 = vadd.f32 0.0, %v817
    %v819 = vpop.f32.mrf.mxu0
    %v820 = vadd.f32 0.0, %v819
    %821 = vdwg.mxu0
    %v822 = vadd.f32 %v687, %v818
    %v823 = vadd.f32 %v688, %v820
    %v824 = vld [vmem:[%s10] sm:$0x1]
    %v826 = vperm.slane %v824, 0
    %v828 = vadd.f32 %v822, %v826
    %v829 = vadd.f32 %v823, %v826
    %830 = vst [vmem:[#allocation14] sm:$0xff] %v828
    %831 = vst [vmem:[#allocation14 + $0x8] sm:$0xff] %v829
    // Predicated region
    $region74: #{tpu_custom_call.1} parent=1 // pred_check
      _
    $region75: #{tpu_custom_call.1} parent=1 // pred_check_branch
      %833 = sbr.rel (0) target = $region77
    $region76: #{tpu_custom_call.1} parent=1 // pred_region
      %835 = vsyncadd [#allocation4], 0
      %s836 = sshll.u32 [#allocation14], 4
      %s837 = int_to_ptr.vmem [resolvable:$true] %s836
      %s838 = sshll.u32 %s11, 4
      %s839 = int_to_ptr.hbm [resolvable:$true] %s838
      %844 = dma.vmem_to_hbm [thread:$0]  %s837, 256, %s839, [#allocation4], 128, 128, 8
    $region77: #{tpu_custom_call.1} parent=1 // pred_fallthru
      _
    // Predicated region
    $region78: #{tpu_custom_call.1} parent=1 // pred_check
      _
    $region79: #{tpu_custom_call.1} parent=1 // pred_check_branch
      %846 = sbr.rel (0) target = $region81
    $region80: #{tpu_custom_call.1} parent=1 // pred_region
      %848 = dma.done [#allocation4], 256
    $region81: #{tpu_custom_call.1} parent=1 // pred_fallthru
      _
    %849 = vsyncpa [#allocation3], 1
    %850 = vsyncpa [#allocation6], 1
    %851 = vsyncpa [#allocation9], 1
    %852 = vsyncpa [#allocation12], 1
    %853 = vsyncpa [#allocation4], 1

// kernel: tpu_custom_call.1
$region0: #{tpu_custom_call.1}
  #allocation0 [shape = 'u32[]', space=smem, size = 0x4, offset = 0x4, fixed_abs, tag = 'smem constant byte address 0x4 - core index']
  #allocation1 [shape = 'u32[72,128]{1,0:T(1,128)}', space=vmem, size = 0x9000, scoped, tag = 'internal scratch']
  %s0 = inlined_call_operand.hbm [shape: f32[2,8,32], index: 0, kind: input, shape index: {}]
  %s1 = inlined_call_operand.hbm [shape: f32[2,8,32], index: 1, kind: input, shape index: {}]
  %s2 = inlined_call_operand.hbm [shape: f32[2,8,32], index: 2, kind: input, shape index: {}]
  %s3 = inlined_call_operand.hbm [shape: bf16[32,32], index: 3, kind: input, shape index: {}]
  %s4 = inlined_call_operand.vmem [shape: f32[1,32], index: 4, kind: input, shape index: {}]
  %s5 = inlined_call_operand.hbm [shape: bf16[32,32], index: 5, kind: input, shape index: {}]
  %s6 = inlined_call_operand.vmem [shape: f32[1,32], index: 6, kind: input, shape index: {}]
  %s7 = inlined_call_operand.hbm [shape: bf16[32,32], index: 7, kind: input, shape index: {}]
  %s8 = inlined_call_operand.vmem [shape: f32[1,32], index: 8, kind: input, shape index: {}]
  %s9 = inlined_call_operand.hbm [shape: bf16[32,128], index: 9, kind: input, shape index: {}]
  %s10 = inlined_call_operand.vmem [shape: f32[1,128], index: 10, kind: input, shape index: {}]
  %s11 = inlined_call_operand.hbm [shape: f32[2,8,128], index: 11, kind: output, shape index: {}]
  %s12 = sld [smem:[#allocation0]]
  $region82: #{tpu_custom_call.1} parent=0
    _
  %s14 = ssub.s32 1, %s12
  %s15 = scalar_select 0, %s14, %s12
  $region1: #{tpu_custom_call.1} parent=0
    #allocation2 [shape = 'u8[8192]{0}', space=vmem, size = 0x2000, scoped, tag = 'input window, operand 0, single buffered']
    #allocation3 [shape = 's32[1]{0}', space=sflag, size = 0x4, scoped, tag = 'scoped memory for tpu_custom_call.1']
    #allocation4 [shape = 's32[1]{0}', space=sflag, size = 0x4, scoped, tag = 'scoped memory for tpu_custom_call.1']
    #allocation5 [shape = 'u8[8192]{0}', space=vmem, size = 0x2000, scoped, tag = 'input window, operand 1, single buffered']
    #allocation6 [shape = 's32[1]{0}', space=sflag, size = 0x4, scoped, tag = 'scoped memory for tpu_custom_call.1']
    #allocation7 [shape = 'u8[8192]{0}', space=vmem, size = 0x2000, scoped, tag = 'input window, operand 2, single buffered']
    #allocation8 [shape = 'u8[8192]{0}', space=vmem, size = 0x2000, scoped, tag = 'input window, operand 3, single buffered']
    #allocation9 [shape = 's32[1]{0}', space=sflag, size = 0x4, scoped, tag = 'scoped memory for tpu_custom_call.1']
    #allocation10 [shape = 'u8[8192]{0}', space=vmem, size = 0x2000, scoped, tag = 'input window, operand 5, single buffered']
    #allocation11 [shape = 'u8[8192]{0}', space=vmem, size = 0x2000, scoped, tag = 'input window, operand 7, single buffered']
    #allocation12 [shape = 's32[1]{0}', space=sflag, size = 0x4, scoped, tag = 'scoped memory for tpu_custom_call.1']
    #allocation13 [shape = 'u8[8192]{0}', space=vmem, size = 0x2000, scoped, tag = 'input window, operand 9, single buffered']
    #allocation14 [shape = 'u8[8192]{0}', space=vmem, size = 0x2000, scoped, tag = 'output window, operand 0, single buffered']
    %16 = vsyncpa [#allocation3], 0
    %17 = vsyncpa [#allocation6], 0
    %18 = vsyncpa [#allocation9], 0
    %19 = vsyncpa [#allocation12], 0
    %20 = vsyncpa [#allocation4], 0
    // Predicated region
    $region2: #{tpu_custom_call.1} parent=1 // pred_check
      _
    $region3: #{tpu_custom_call.1} parent=1 // pred_check_branch
      %22 = sbr.rel (0) target = $region5
    $region4: #{tpu_custom_call.1} parent=1 // pred_region
      %24 = vsyncadd [#allocation3], 0
      %s25 = sshll.u32 %s0, 4
      %s26 = int_to_ptr.hbm [resolvable:$true] %s25
      %s27 = sshll.u32 [#allocation2], 4
      %s28 = int_to_ptr.vmem [resolvable:$true] %s27
      %33 = dma.hbm_to_vmem [thread:$0]  %s26, 256, %s28, [#allocation3], 128, 128, 8
    $region5: #{tpu_custom_call.1} parent=1 // pred_fallthru
      _
    // Predicated region
    $region6: #{tpu_custom_call.1} parent=1 // pred_check
      _
    $region7: #{tpu_custom_call.1} parent=1 // pred_check_branch
      %35 = sbr.rel (0) target = $region9
    $region8: #{tpu_custom_call.1} parent=1 // pred_region
      %37 = vsyncadd [#allocation6], 0
      %s38 = sshll.u32 %s1, 4
      %s39 = int_to_ptr.hbm [resolvable:$true] %s38
      %s40 = sshll.u32 [#allocation5], 4
      %s41 = int_to_ptr.vmem [resolvable:$true] %s40
      %46 = dma.hbm_to_vmem [thread:$0]  %s39, 256, %s41, [#allocation6], 128, 128, 8
    $region9: #{tpu_custom_call.1} parent=1 // pred_fallthru
      _
    // Predicated region
    $region10: #{tpu_custom_call.1} parent=1 // pred_check
      _
    $region11: #{tpu_custom_call.1} parent=1 // pred_check_branch
      %48 = sbr.rel (0) target = $region13
    $region12: #{tpu_custom_call.1} parent=1 // pred_region
      %50 = vsyncadd [#allocation6], 0
      %s51 = sshll.u32 %s2, 4
      %s52 = int_to_ptr.hbm [resolvable:$true] %s51
      %s53 = sshll.u32 [#allocation7], 4
      %s54 = int_to_ptr.vmem [resolvable:$true] %s53
      %59 = dma.hbm_to_vmem [thread:$0]  %s52, 256, %s54, [#allocation6], 128, 128, 8
    $region13: #{tpu_custom_call.1} parent=1 // pred_fallthru
      _
    // Predicated region
    $region14: #{tpu_custom_call.1} parent=1 // pred_check
      _
    $region15: #{tpu_custom_call.1} parent=1 // pred_check_branch
      %61 = sbr.rel (0) target = $region17
    $region16: #{tpu_custom_call.1} parent=1 // pred_region
      %63 = vsyncadd [#allocation9], 0
      %s64 = sshll.u32 %s3, 4
      %s65 = int_to_ptr.hbm [resolvable:$true] %s64
      %s66 = sshll.u32 [#allocation8], 4
      %s67 = int_to_ptr.vmem [resolvable:$true] %s66
      %72 = dma.hbm_to_vmem [thread:$0]  %s65, 256, %s67, [#allocation9], 64, 64, 4
    $region17: #{tpu_custom_call.1} parent=1 // pred_fallthru
      _
    // Predicated region
    $region18: #{tpu_custom_call.1} parent=1 // pred_check
      _
    $region19: #{tpu_custom_call.1} parent=1 // pred_check_branch
      %74 = sbr.rel (0) target = $region21
    $region20: #{tpu_custom_call.1} parent=1 // pred_region
      _
    $region21: #{tpu_custom_call.1} parent=1 // pred_fallthru
      _
    // Predicated region
    $region22: #{tpu_custom_call.1} parent=1 // pred_check
      _
    $region23: #{tpu_custom_call.1} parent=1 // pred_check_branch
      %76 = sbr.rel (0) target = $region25
    $region24: #{tpu_custom_call.1} parent=1 // pred_region
      %78 = vsyncadd [#allocation9], 0
      %s79 = sshll.u32 %s5, 4
      %s80 = int_to_ptr.hbm [resolvable:$true] %s79
      %s81 = sshll.u32 [#allocation10], 4
      %s82 = int_to_ptr.vmem [resolvable:$true] %s81
      %87 = dma.hbm_to_vmem [thread:$0]  %s80, 256, %s82, [#allocation9], 64, 64, 4
    $region25: #{tpu_custom_call.1} parent=1 // pred_fallthru
      _
    // Predicated region
    $region26: #{tpu_custom_call.1} parent=1 // pred_check
      _
    $region27: #{tpu_custom_call.1} parent=1 // pred_check_branch
      %89 = sbr.rel (0) target = $region29
    $region28: #{tpu_custom_call.1} parent=1 // pred_region
      _
    $region29: #{tpu_custom_call.1} parent=1 // pred_fallthru
      _
    // Predicated region
    $region30: #{tpu_custom_call.1} parent=1 // pred_check
      _
    $region31: #{tpu_custom_call.1} parent=1 // pred_check_branch
      %91 = sbr.rel (0) target = $region33
    $region32: #{tpu_custom_call.1} parent=1 // pred_region
      %93 = vsyncadd [#allocation12], 0
      %s94 = sshll.u32 %s7, 4
      %s95 = int_to_ptr.hbm [resolvable:$true] %s94
      %s96 = sshll.u32 [#allocation11], 4
      %s97 = int_to_ptr.vmem [resolvable:$true] %s96
      %102 = dma.hbm_to_vmem [thread:$0]  %s95, 256, %s97, [#allocation12], 64, 64, 4
    $region33: #{tpu_custom_call.1} parent=1 // pred_fallthru
      _
    // Predicated region
    $region34: #{tpu_custom_call.1} parent=1 // pred_check
      _
    $region35: #{tpu_custom_call.1} parent=1 // pred_check_branch
      %104 = sbr.rel (0) target = $region37
    $region36: #{tpu_custom_call.1} parent=1 // pred_region
      _
    $region37: #{tpu_custom_call.1} parent=1 // pred_fallthru
      _
    // Predicated region
    $region38: #{tpu_custom_call.1} parent=1 // pred_check
      _
    $region39: #{tpu_custom_call.1} parent=1 // pred_check_branch
      %106 = sbr.rel (0) target = $region41
    $region40: #{tpu_custom_call.1} parent=1 // pred_region
      %108 = vsyncadd [#allocation12], 0
      %s109 = sshll.u32 %s9, 4
      %s110 = int_to_ptr.hbm [resolvable:$true] %s109
      %s111 = sshll.u32 [#allocation13], 4
      %s112 = int_to_ptr.vmem [resolvable:$true] %s111
      %117 = dma.hbm_to_vmem [thread:$0]  %s110, 256, %s112, [#allocation12], 64, 64, 4
    $region41: #{tpu_custom_call.1} parent=1 // pred_fallthru
      _
    // Predicated region
    $region42: #{tpu_custom_call.1} parent=1 // pred_check
      _
    $region43: #{tpu_custom_call.1} parent=1 // pred_check_branch
      %119 = sbr.rel (0) target = $region45
    $region44: #{tpu_custom_call.1} parent=1 // pred_region
      _
    $region45: #{tpu_custom_call.1} parent=1 // pred_fallthru
      _
    // Predicated region
    $region46: #{tpu_custom_call.1} parent=1 // pred_check
      _
    $region47: #{tpu_custom_call.1} parent=1 // pred_check_branch
      %121 = sbr.rel (0) target = $region49
    $region48: #{tpu_custom_call.1} parent=1 // pred_region
      %123 = dma.done [#allocation3], 256
    $region49: #{tpu_custom_call.1} parent=1 // pred_fallthru
      _
    // Predicated region
    $region50: #{tpu_custom_call.1} parent=1 // pred_check
      _
    $region51: #{tpu_custom_call.1} parent=1 // pred_check_branch
      %125 = sbr.rel (0) target = $region53
    $region52: #{tpu_custom_call.1} parent=1 // pred_region
      %127 = dma.done [#allocation6], 256
    $region53: #{tpu_custom_call.1} parent=1 // pred_fallthru
      _
    // Predicated region
    $region54: #{tpu_custom_call.1} parent=1 // pred_check
      _
    $region55: #{tpu_custom_call.1} parent=1 // pred_check_branch
      %129 = sbr.rel (0) target = $region57
    $region56: #{tpu_custom_call.1} parent=1 // pred_region
      %131 = dma.done [#allocation6], 256
    $region57: #{tpu_custom_call.1} parent=1 // pred_fallthru
      _
    // Predicated region
    $region58: #{tpu_custom_call.1} parent=1 // pred_check
      _
    $region59: #{tpu_custom_call.1} parent=1 // pred_check_branch
      %133 = sbr.rel (0) target = $region61
    $region60: #{tpu_custom_call.1} parent=1 // pred_region
      %135 = dma.done [#allocation9], 256
    $region61: #{tpu_custom_call.1} parent=1 // pred_fallthru
      _
    // Predicated region
    $region62: #{tpu_custom_call.1} parent=1 // pred_check
      _
    $region63: #{tpu_custom_call.1} parent=1 // pred_check_branch
      %137 = sbr.rel (0) target = $region65
    $region64: #{tpu_custom_call.1} parent=1 // pred_region
      %139 = dma.done [#allocation9], 256
    $region65: #{tpu_custom_call.1} parent=1 // pred_fallthru
      _
    // Predicated region
    $region66: #{tpu_custom_call.1} parent=1 // pred_check
      _
    $region67: #{tpu_custom_call.1} parent=1 // pred_check_branch
      %141 = sbr.rel (0) target = $region69
    $region68: #{tpu_custom_call.1} parent=1 // pred_region
      %143 = dma.done [#allocation12], 256
    $region69: #{tpu_custom_call.1} parent=1 // pred_fallthru
      _
    // Predicated region
    $region70: #{tpu_custom_call.1} parent=1 // pred_check
      _
    $region71: #{tpu_custom_call.1} parent=1 // pred_check_branch
      %145 = sbr.rel (0) target = $region73
    $region72: #{tpu_custom_call.1} parent=1 // pred_region
      %147 = dma.done [#allocation12], 256
    $region73: #{tpu_custom_call.1} parent=1 // pred_fallthru
      _
    %v149 = vld [vmem:[#allocation2] sm:$0xff]
    %v150 = vld [vmem:[#allocation2 + $0x8] sm:$0xff]
    %v151 = vpack.c.bf16 %v150, %v149
    %v152 = vld [vmem:[#allocation5] sm:$0xff]
    %v153 = vld [vmem:[#allocation5 + $0x8] sm:$0xff]
    %v154 = vpack.c.bf16 %v153, %v152
    %v155 = vld [vmem:[#allocation7] sm:$0xff]
    %v156 = vld [vmem:[#allocation7 + $0x8] sm:$0xff]
    %v157 = vpack.c.bf16 %v156, %v155
    %v158 = vld [vmem:[#allocation8] sm:$0xf]
    %v159 = vld [vmem:[#allocation8 + $0x4] sm:$0xf]
    %v160 = vld [vmem:[#allocation8 + $0x8] sm:$0xf]
    %v161 = vld [vmem:[#allocation8 + $0xc] sm:$0xf]
    %v162 = vld [vmem:[%s4] sm:$0x1]
    %v164 = vperm.slane %v162, 0
    %v170 = vunpack.c.l.b16 %v158
    %v171 = vunpack.c.l.b16 %v159
    %v172 = vunpack.c.l.b16 %v160
    %v173 = vunpack.c.l.b16 %v161
    %v174 = vpack.c.b16 %v171, %v170
    %v175 = vpack.c.b16 %v173, %v172
    %vm178 = vcmask 261120
    %v180 = vsel %vm178, %v151, 0
    %182 = vmatpush.bf16.msra.mxu0 0
    %183 = vmatpush.bf16.msra.mxu0 0
    %184 = vmatpush.bf16.msra.mxu0 0
    %185 = vmatpush.bf16.msra.mxu0 0
    %186 = vmatpush.bf16.msra.mxu0 0
    %187 = vmatpush.bf16.msra.mxu0 0
    %188 = vmatpush.bf16.msra.mxu0 %v175
    %189 = vmatpush.bf16.msra.mxu0 %v174
    %190 = vmatmul.bf16.gmra.mxu0 %v180
    %v191 = vpop.f32.mrf.mxu0
    %v192 = vadd.f32 %v164, %v191
    %v193 = vpop.f32.mrf.mxu0
    %v194 = vadd.f32 %v164, %v193
    %195 = vdwg.mxu0
    %v196 = vld [vmem:[#allocation10] sm:$0xf]
    %v197 = vld [vmem:[#allocation10 + $0x4] sm:$0xf]
    %v198 = vld [vmem:[#allocation10 + $0x8] sm:$0xf]
    %v199 = vld [vmem:[#allocation10 + $0xc] sm:$0xf]
    %v200 = vld [vmem:[%s6] sm:$0x1]
    %v202 = vperm.slane %v200, 0
    %v208 = vunpack.c.l.b16 %v196
    %v209 = vunpack.c.l.b16 %v197
    %v210 = vunpack.c.l.b16 %v198
    %v211 = vunpack.c.l.b16 %v199
    %v212 = vpack.c.b16 %v209, %v208
    %v213 = vpack.c.b16 %v211, %v210
    %v217 = vsel %vm178, %v154, 0
    %219 = vmatpush.bf16.msra.mxu0 0
    %220 = vmatpush.bf16.msra.mxu0 0
    %221 = vmatpush.bf16.msra.mxu0 0
    %222 = vmatpush.bf16.msra.mxu0 0
    %223 = vmatpush.bf16.msra.mxu0 0
    %224 = vmatpush.bf16.msra.mxu0 0
    %225 = vmatpush.bf16.msra.mxu0 %v213
    %226 = vmatpush.bf16.msra.mxu0 %v212
    %227 = vmatmul.bf16.gmra.mxu0 %v217
    %v228 = vpop.f32.mrf.mxu0
    %v229 = vadd.f32 %v202, %v228
    %v230 = vpop.f32.mrf.mxu0
    %v231 = vadd.f32 %v202, %v230
    %232 = vdwg.mxu0
    %v233 = vld [vmem:[#allocation11] sm:$0xf]
    %v234 = vld [vmem:[#allocation11 + $0x4] sm:$0xf]
    %v235 = vld [vmem:[#allocation11 + $0x8] sm:$0xf]
    %v236 = vld [vmem:[#allocation11 + $0xc] sm:$0xf]
    %v237 = vld [vmem:[%s8] sm:$0x1]
    %v239 = vperm.slane %v237, 0
    %v245 = vunpack.c.l.b16 %v233
    %v246 = vunpack.c.l.b16 %v234
    %v247 = vunpack.c.l.b16 %v235
    %v248 = vunpack.c.l.b16 %v236
    %v249 = vpack.c.b16 %v246, %v245
    %v250 = vpack.c.b16 %v248, %v247
    %v254 = vsel %vm178, %v157, 0
    %256 = vmatpush.bf16.msra.mxu0 0
    %257 = vmatpush.bf16.msra.mxu0 0
    %258 = vmatpush.bf16.msra.mxu0 0
    %259 = vmatpush.bf16.msra.mxu0 0
    %260 = vmatpush.bf16.msra.mxu0 0
    %261 = vmatpush.bf16.msra.mxu0 0
    %262 = vmatpush.bf16.msra.mxu0 %v250
    %263 = vmatpush.bf16.msra.mxu0 %v249
    %264 = vmatmul.bf16.gmra.mxu0 %v254
    %v265 = vpop.f32.mrf.mxu0
    %v266 = vadd.f32 %v239, %v265
    %v267 = vpop.f32.mrf.mxu0
    %v268 = vadd.f32 %v239, %v267
    %269 = vdwg.mxu0
    %v270 = vpack.c.bf16 %v192, %v192
    %v271 = vpack.c.bf16 %v194, %v194
    %v272 = vpack.c.bf16 %v229, %v229
    %v273 = vpack.c.bf16 %v231, %v231
    %v274 = vpack.c.bf16 %v266, %v266
    %v275 = vpack.c.bf16 %v268, %v268
    %v276 = vld [vmem:[#allocation13] sm:$0xf]
    %v277 = vld [vmem:[#allocation13 + $0x4] sm:$0xf]
    %v278 = vld [vmem:[#allocation13 + $0x8] sm:$0xf]
    %v279 = vld [vmem:[#allocation13 + $0xc] sm:$0xf]
    %vm280 = vcmask 64512
    %v282 = vsel %vm280, %v270, 0
    %v285 = vsel %vm280, %v272, 0
    %287 = vmatpush.bf16.xpose.msra.mxu0 0
    %288 = vmatpush.bf16.xpose.msra.mxu0 0
    %289 = vmatpush.bf16.xpose.msra.mxu0 0
    %290 = vmatpush.bf16.xpose.msra.mxu0 0
    %291 = vmatpush.bf16.xpose.msra.mxu0 0
    %292 = vmatpush.bf16.xpose.msra.mxu0 0
    %293 = vmatpush.bf16.xpose.msra.mxu0 0
    %294 = vmatpush.bf16.xpose.msra.mxu0 %v285
    %295 = vmatmul.bf16.gmra.mxu0 %v282
    %v296 = vpop.f32.mrf.mxu0
    %v297 = vadd.f32 0.0, %v296
    %v298 = vpop.f32.mrf.mxu0
    %299 = vdwg.mxu0
    %v301 = vsel %vm280, %v271, 0
    %v304 = vsel %vm280, %v273, 0
    %306 = vmatpush.bf16.xpose.msra.mxu0 0
    %307 = vmatpush.bf16.xpose.msra.mxu0 0
    %308 = vmatpush.bf16.xpose.msra.mxu0 0
    %309 = vmatpush.bf16.xpose.msra.mxu0 0
    %310 = vmatpush.bf16.xpose.msra.mxu0 0
    %311 = vmatpush.bf16.xpose.msra.mxu0 0
    %312 = vmatpush.bf16.xpose.msra.mxu0 0
    %313 = vmatpush.bf16.xpose.msra.mxu0 %v304
    %314 = vmatmul.bf16.gmra.mxu0 %v301
    %v315 = vpop.f32.mrf.mxu0
    %v316 = vadd.f32 0.0, %v315
    %v317 = vpop.f32.mrf.mxu0
    %318 = vdwg.mxu0
    %v319 = vsel %vm280, %v297, -inf
    %320 = vmax.xlane.f32.xlu0 %v319
    %v321 = vpop.xlane.xlu0 %320
    %v322 = vsel %vm280, %v316, -inf
    %323 = vmax.xlane.f32.xlu0 %v322
    %v324 = vpop.xlane.xlu0 %323
    %v325 = vsub.f32 %v297, %v321
    %v326 = vsub.f32 %v316, %v324
    %v327 = vmul.f32 %v325, 1.442695
    %v328 = vpow.pop %v327
    %v329 = vmul.f32 %v326, 1.442695
    %v330 = vpow.pop %v329
    %v331 = vsel %vm280, %v328, 0.0
    %332 = vadd.xlane.f32.xlu0 %v331
    %v333 = vpop.xlane.xlu0 %332
    %v334 = vsel %vm280, %v330, 0.0
    %335 = vadd.xlane.f32.xlu0 %v334
    %v336 = vpop.xlane.xlu0 %335
    %v337 = vrcp.pop %v333
    %v338 = vrcp.pop %v336
    %v339 = vmul.f32 %v328, %v337
    %v340 = vmul.f32 %v330, %v338
    %v341 = vpack.c.bf16 %v339, %v339
    %v342 = vpack.c.bf16 %v340, %v340
    %v344 = vsel %vm280, %v341, 0
    %vm346 = vcmask 1043456
    %v348 = vsel %vm346, %v274, 0
    %350 = vmatpush.bf16.msra.mxu0 0
    %351 = vmatpush.bf16.msra.mxu0 0
    %352 = vmatpush.bf16.msra.mxu0 0
    %353 = vmatpush.bf16.msra.mxu0 0
    %354 = vmatpush.bf16.msra.mxu0 0
    %355 = vmatpush.bf16.msra.mxu0 0
    %356 = vmatpush.bf16.msra.mxu0 0
    %357 = vmatpush.bf16.msra.mxu0 %v348
    %358 = vmatmul.bf16.gmra.mxu0 %v344
    %v359 = vpop.f32.mrf.mxu0
    %v360 = vadd.f32 0.0, %v359
    %v361 = vpop.f32.mrf.mxu0
    %362 = vdwg.mxu0
    %v364 = vsel %vm280, %v342, 0
    %v367 = vsel %vm346, %v275, 0
    %369 = vmatpush.bf16.msra.mxu0 0
    %370 = vmatpush.bf16.msra.mxu0 0
    %371 = vmatpush.bf16.msra.mxu0 0
    %372 = vmatpush.bf16.msra.mxu0 0
    %373 = vmatpush.bf16.msra.mxu0 0
    %374 = vmatpush.bf16.msra.mxu0 0
    %375 = vmatpush.bf16.msra.mxu0 0
    %376 = vmatpush.bf16.msra.mxu0 %v367
    %377 = vmatmul.bf16.gmra.mxu0 %v364
    %v378 = vpop.f32.mrf.mxu0
    %v379 = vadd.f32 0.0, %v378
    %v380 = vpop.f32.mrf.mxu0
    %381 = vdwg.mxu0
    %v382 = vpack.c.bf16 %v379, %v360
    %v384 = vunpack.c.l.b16 %v270
    %v385 = vpack.c.b16 %v384, %v384
    %386 = vrot.lane.b32.xlu0 %v385, 120
    %v387 = vpop.permute.xlu0 %386
    %v389 = vunpack.c.l.b16 %v272
    %v390 = vpack.c.b16 %v389, %v389
    %391 = vrot.lane.b32.xlu0 %v390, 120
    %v392 = vpop.permute.xlu0 %391
    %v394 = vsel %vm280, %v387, 0
    %v397 = vsel %vm280, %v392, 0
    %399 = vmatpush.bf16.xpose.msra.mxu0 0
    %400 = vmatpush.bf16.xpose.msra.mxu0 0
    %401 = vmatpush.bf16.xpose.msra.mxu0 0
    %402 = vmatpush.bf16.xpose.msra.mxu0 0
    %403 = vmatpush.bf16.xpose.msra.mxu0 0
    %404 = vmatpush.bf16.xpose.msra.mxu0 0
    %405 = vmatpush.bf16.xpose.msra.mxu0 0
    %406 = vmatpush.bf16.xpose.msra.mxu0 %v397
    %407 = vmatmul.bf16.gmra.mxu0 %v394
    %v408 = vpop.f32.mrf.mxu0
    %v409 = vadd.f32 0.0, %v408
    %v410 = vpop.f32.mrf.mxu0
    %411 = vdwg.mxu0
    %v413 = vunpack.c.l.b16 %v271
    %v414 = vpack.c.b16 %v413, %v413
    %415 = vrot.lane.b32.xlu0 %v414, 120
    %v416 = vpop.permute.xlu0 %415
    %v418 = vunpack.c.l.b16 %v273
    %v419 = vpack.c.b16 %v418, %v418
    %420 = vrot.lane.b32.xlu0 %v419, 120
    %v421 = vpop.permute.xlu0 %420
    %v423 = vsel %vm280, %v416, 0
    %v426 = vsel %vm280, %v421, 0
    %428 = vmatpush.bf16.xpose.msra.mxu0 0
    %429 = vmatpush.bf16.xpose.msra.mxu0 0
    %430 = vmatpush.bf16.xpose.msra.mxu0 0
    %431 = vmatpush.bf16.xpose.msra.mxu0 0
    %432 = vmatpush.bf16.xpose.msra.mxu0 0
    %433 = vmatpush.bf16.xpose.msra.mxu0 0
    %434 = vmatpush.bf16.xpose.msra.mxu0 0
    %435 = vmatpush.bf16.xpose.msra.mxu0 %v426
    %436 = vmatmul.bf16.gmra.mxu0 %v423
    %v437 = vpop.f32.mrf.mxu0
    %v438 = vadd.f32 0.0, %v437
    %v439 = vpop.f32.mrf.mxu0
    %440 = vdwg.mxu0
    %v441 = vsel %vm280, %v409, -inf
    %442 = vmax.xlane.f32.xlu0 %v441
    %v443 = vpop.xlane.xlu0 %442
    %v444 = vsel %vm280, %v438, -inf
    %445 = vmax.xlane.f32.xlu0 %v444
    %v446 = vpop.xlane.xlu0 %445
    %v447 = vsub.f32 %v409, %v443
    %v448 = vsub.f32 %v438, %v446
    %v449 = vmul.f32 %v447, 1.442695
    %v450 = vpow.pop %v449
    %v451 = vmul.f32 %v448, 1.442695
    %v452 = vpow.pop %v451
    %v453 = vsel %vm280, %v450, 0.0
    %454 = vadd.xlane.f32.xlu0 %v453
    %v455 = vpop.xlane.xlu0 %454
    %v456 = vsel %vm280, %v452, 0.0
    %457 = vadd.xlane.f32.xlu0 %v456
    %v458 = vpop.xlane.xlu0 %457
    %v459 = vrcp.pop %v455
    %v460 = vrcp.pop %v458
    %v461 = vmul.f32 %v450, %v459
    %v462 = vmul.f32 %v452, %v460
    %v463 = vpack.c.bf16 %v461, %v461
    %v464 = vpack.c.bf16 %v462, %v462
    %v466 = vunpack.c.l.b16 %v274
    %v467 = vpack.c.b16 %v466, %v466
    %468 = vrot.lane.b32.xlu0 %v467, 120
    %v469 = vpop.permute.xlu0 %468
    %v471 = vsel %vm280, %v463, 0
    %v474 = vsel %vm346, %v469, 0
    %476 = vmatpush.bf16.msra.mxu0 0
    %477 = vmatpush.bf16.msra.mxu0 0
    %478 = vmatpush.bf16.msra.mxu0 0
    %479 = vmatpush.bf16.msra.mxu0 0
    %480 = vmatpush.bf16.msra.mxu0 0
    %481 = vmatpush.bf16.msra.mxu0 0
    %482 = vmatpush.bf16.msra.mxu0 0
    %483 = vmatpush.bf16.msra.mxu0 %v474
    %484 = vmatmul.bf16.gmra.mxu0 %v471
    %v485 = vpop.f32.mrf.mxu0
    %v486 = vadd.f32 0.0, %v485
    %v487 = vpop.f32.mrf.mxu0
    %488 = vdwg.mxu0
    %v490 = vunpack.c.l.b16 %v275
    %v491 = vpack.c.b16 %v490, %v490
    %492 = vrot.lane.b32.xlu0 %v491, 120
    %v493 = vpop.permute.xlu0 %492
    %v495 = vsel %vm280, %v464, 0
    %v498 = vsel %vm346, %v493, 0
    %500 = vmatpush.bf16.msra.mxu0 0
    %501 = vmatpush.bf16.msra.mxu0 0
    %502 = vmatpush.bf16.msra.mxu0 0
    %503 = vmatpush.bf16.msra.mxu0 0
    %504 = vmatpush.bf16.msra.mxu0 0
    %505 = vmatpush.bf16.msra.mxu0 0
    %506 = vmatpush.bf16.msra.mxu0 0
    %507 = vmatpush.bf16.msra.mxu0 %v498
    %508 = vmatmul.bf16.gmra.mxu0 %v495
    %v509 = vpop.f32.mrf.mxu0
    %v510 = vadd.f32 0.0, %v509
    %v511 = vpop.f32.mrf.mxu0
    %512 = vdwg.mxu0
    %v513 = vpack.c.bf16 %v510, %v486
    %v515 = vsel %vm280, %v513, 0
    %v518 = vsel %vm346, %v277, 0
    %520 = vmatpush.bf16.msra.mxu0 0
    %521 = vmatpush.bf16.msra.mxu0 0
    %522 = vmatpush.bf16.msra.mxu0 0
    %523 = vmatpush.bf16.msra.mxu0 0
    %524 = vmatpush.bf16.msra.mxu0 0
    %525 = vmatpush.bf16.msra.mxu0 0
    %526 = vmatpush.bf16.msra.mxu0 0
    %527 = vmatpush.bf16.msra.mxu0 %v518
    %528 = vmatmul.bf16.gmra.mxu0 %v515
    %v529 = vpop.f32.mrf.mxu0
    %v530 = vadd.f32 0.0, %v529
    %v531 = vpop.f32.mrf.mxu0
    %v532 = vadd.f32 0.0, %v531
    %533 = vdwg.mxu0
    %v535 = vsel %vm280, %v382, 0
    %v538 = vsel %vm346, %v276, 0
    %540 = vmatpush.bf16.msra.mxu0 0
    %541 = vmatpush.bf16.msra.mxu0 0
    %542 = vmatpush.bf16.msra.mxu0 0
    %543 = vmatpush.bf16.msra.mxu0 0
    %544 = vmatpush.bf16.msra.mxu0 0
    %545 = vmatpush.bf16.msra.mxu0 0
    %546 = vmatpush.bf16.msra.mxu0 0
    %547 = vmatpush.bf16.msra.mxu0 %v538
    %548 = vmatmul.bf16.gmra.mxu0 %v535
    %v549 = vpop.f32.mrf.mxu0
    %v550 = vadd.f32 %v530, %v549
    %v551 = vpop.f32.mrf.mxu0
    %v552 = vadd.f32 %v532, %v551
    %553 = vdwg.mxu0
    %554 = vrot.lane.b32.xlu0 %v385, 112
    %v555 = vpop.permute.xlu0 %554
    %556 = vrot.lane.b32.xlu0 %v390, 112
    %v557 = vpop.permute.xlu0 %556
    %v559 = vsel %vm280, %v555, 0
    %v562 = vsel %vm280, %v557, 0
    %564 = vmatpush.bf16.xpose.msra.mxu0 0
    %565 = vmatpush.bf16.xpose.msra.mxu0 0
    %566 = vmatpush.bf16.xpose.msra.mxu0 0
    %567 = vmatpush.bf16.xpose.msra.mxu0 0
    %568 = vmatpush.bf16.xpose.msra.mxu0 0
    %569 = vmatpush.bf16.xpose.msra.mxu0 0
    %570 = vmatpush.bf16.xpose.msra.mxu0 0
    %571 = vmatpush.bf16.xpose.msra.mxu0 %v562
    %572 = vmatmul.bf16.gmra.mxu0 %v559
    %v573 = vpop.f32.mrf.mxu0
    %v574 = vadd.f32 0.0, %v573
    %v575 = vpop.f32.mrf.mxu0
    %576 = vdwg.mxu0
    %577 = vrot.lane.b32.xlu0 %v414, 112
    %v578 = vpop.permute.xlu0 %577
    %579 = vrot.lane.b32.xlu0 %v419, 112
    %v580 = vpop.permute.xlu0 %579
    %v582 = vsel %vm280, %v578, 0
    %v585 = vsel %vm280, %v580, 0
    %587 = vmatpush.bf16.xpose.msra.mxu0 0
    %588 = vmatpush.bf16.xpose.msra.mxu0 0
    %589 = vmatpush.bf16.xpose.msra.mxu0 0
    %590 = vmatpush.bf16.xpose.msra.mxu0 0
    %591 = vmatpush.bf16.xpose.msra.mxu0 0
    %592 = vmatpush.bf16.xpose.msra.mxu0 0
    %593 = vmatpush.bf16.xpose.msra.mxu0 0
    %594 = vmatpush.bf16.xpose.msra.mxu0 %v585
    %595 = vmatmul.bf16.gmra.mxu0 %v582
    %v596 = vpop.f32.mrf.mxu0
    %v597 = vadd.f32 0.0, %v596
    %v598 = vpop.f32.mrf.mxu0
    %599 = vdwg.mxu0
    %v600 = vsel %vm280, %v574, -inf
    %601 = vmax.xlane.f32.xlu0 %v600
    %v602 = vpop.xlane.xlu0 %601
    %v603 = vsel %vm280, %v597, -inf
    %604 = vmax.xlane.f32.xlu0 %v603
    %v605 = vpop.xlane.xlu0 %604
    %v606 = vsub.f32 %v574, %v602
    %v607 = vsub.f32 %v597, %v605
    %v608 = vmul.f32 %v606, 1.442695
    %v609 = vpow.pop %v608
    %v610 = vmul.f32 %v607, 1.442695
    %v611 = vpow.pop %v610
    %v612 = vsel %vm280, %v609, 0.0
    %613 = vadd.xlane.f32.xlu0 %v612
    %v614 = vpop.xlane.xlu0 %613
    %v615 = vsel %vm280, %v611, 0.0
    %616 = vadd.xlane.f32.xlu0 %v615
    %v617 = vpop.xlane.xlu0 %616
    %v618 = vrcp.pop %v614
    %v619 = vrcp.pop %v617
    %v620 = vmul.f32 %v609, %v618
    %v621 = vmul.f32 %v611, %v619
    %v622 = vpack.c.bf16 %v620, %v620
    %v623 = vpack.c.bf16 %v621, %v621
    %624 = vrot.lane.b32.xlu0 %v467, 112
    %v625 = vpop.permute.xlu0 %624
    %v627 = vsel %vm280, %v622, 0
    %v630 = vsel %vm346, %v625, 0
    %632 = vmatpush.bf16.msra.mxu0 0
    %633 = vmatpush.bf16.msra.mxu0 0
    %634 = vmatpush.bf16.msra.mxu0 0
    %635 = vmatpush.bf16.msra.mxu0 0
    %636 = vmatpush.bf16.msra.mxu0 0
    %637 = vmatpush.bf16.msra.mxu0 0
    %638 = vmatpush.bf16.msra.mxu0 0
    %639 = vmatpush.bf16.msra.mxu0 %v630
    %640 = vmatmul.bf16.gmra.mxu0 %v627
    %v641 = vpop.f32.mrf.mxu0
    %v642 = vadd.f32 0.0, %v641
    %v643 = vpop.f32.mrf.mxu0
    %644 = vdwg.mxu0
    %645 = vrot.lane.b32.xlu0 %v491, 112
    %v646 = vpop.permute.xlu0 %645
    %v648 = vsel %vm280, %v623, 0
    %v651 = vsel %vm346, %v646, 0
    %653 = vmatpush.bf16.msra.mxu0 0
    %654 = vmatpush.bf16.msra.mxu0 0
    %655 = vmatpush.bf16.msra.mxu0 0
    %656 = vmatpush.bf16.msra.mxu0 0
    %657 = vmatpush.bf16.msra.mxu0 0
    %658 = vmatpush.bf16.msra.mxu0 0
    %659 = vmatpush.bf16.msra.mxu0 0
    %660 = vmatpush.bf16.msra.mxu0 %v651
    %661 = vmatmul.bf16.gmra.mxu0 %v648
    %v662 = vpop.f32.mrf.mxu0
    %v663 = vadd.f32 0.0, %v662
    %v664 = vpop.f32.mrf.mxu0
    %665 = vdwg.mxu0
    %v666 = vpack.c.bf16 %v663, %v642
    %v668 = vsel %vm280, %v666, 0
    %v671 = vsel %vm346, %v278, 0
    %673 = vmatpush.bf16.msra.mxu0 0
    %674 = vmatpush.bf16.msra.mxu0 0
    %675 = vmatpush.bf16.msra.mxu0 0
    %676 = vmatpush.bf16.msra.mxu0 0
    %677 = vmatpush.bf16.msra.mxu0 0
    %678 = vmatpush.bf16.msra.mxu0 0
    %679 = vmatpush.bf16.msra.mxu0 0
    %680 = vmatpush.bf16.msra.mxu0 %v671
    %681 = vmatmul.bf16.gmra.mxu0 %v668
    %v682 = vpop.f32.mrf.mxu0
    %v683 = vadd.f32 0.0, %v682
    %v684 = vpop.f32.mrf.mxu0
    %v685 = vadd.f32 0.0, %v684
    %686 = vdwg.mxu0
    %v687 = vadd.f32 %v550, %v683
    %v688 = vadd.f32 %v552, %v685
    %689 = vrot.lane.b32.xlu0 %v385, 104
    %v690 = vpop.permute.xlu0 %689
    %691 = vrot.lane.b32.xlu0 %v390, 104
    %v692 = vpop.permute.xlu0 %691
    %v694 = vsel %vm280, %v690, 0
    %v697 = vsel %vm280, %v692, 0
    %699 = vmatpush.bf16.xpose.msra.mxu0 0
    %700 = vmatpush.bf16.xpose.msra.mxu0 0
    %701 = vmatpush.bf16.xpose.msra.mxu0 0
    %702 = vmatpush.bf16.xpose.msra.mxu0 0
    %703 = vmatpush.bf16.xpose.msra.mxu0 0
    %704 = vmatpush.bf16.xpose.msra.mxu0 0
    %705 = vmatpush.bf16.xpose.msra.mxu0 0
    %706 = vmatpush.bf16.xpose.msra.mxu0 %v697
    %707 = vmatmul.bf16.gmra.mxu0 %v694
    %v708 = vpop.f32.mrf.mxu0
    %v709 = vadd.f32 0.0, %v708
    %v710 = vpop.f32.mrf.mxu0
    %711 = vdwg.mxu0
    %712 = vrot.lane.b32.xlu0 %v414, 104
    %v713 = vpop.permute.xlu0 %712
    %714 = vrot.lane.b32.xlu0 %v419, 104
    %v715 = vpop.permute.xlu0 %714
    %v717 = vsel %vm280, %v713, 0
    %v720 = vsel %vm280, %v715, 0
    %722 = vmatpush.bf16.xpose.msra.mxu0 0
    %723 = vmatpush.bf16.xpose.msra.mxu0 0
    %724 = vmatpush.bf16.xpose.msra.mxu0 0
    %725 = vmatpush.bf16.xpose.msra.mxu0 0
    %726 = vmatpush.bf16.xpose.msra.mxu0 0
    %727 = vmatpush.bf16.xpose.msra.mxu0 0
    %728 = vmatpush.bf16.xpose.msra.mxu0 0
    %729 = vmatpush.bf16.xpose.msra.mxu0 %v720
    %730 = vmatmul.bf16.gmra.mxu0 %v717
    %v731 = vpop.f32.mrf.mxu0
    %v732 = vadd.f32 0.0, %v731
    %v733 = vpop.f32.mrf.mxu0
    %734 = vdwg.mxu0
    %v735 = vsel %vm280, %v709, -inf
    %736 = vmax.xlane.f32.xlu0 %v735
    %v737 = vpop.xlane.xlu0 %736
    %v738 = vsel %vm280, %v732, -inf
    %739 = vmax.xlane.f32.xlu0 %v738
    %v740 = vpop.xlane.xlu0 %739
    %v741 = vsub.f32 %v709, %v737
    %v742 = vsub.f32 %v732, %v740
    %v743 = vmul.f32 %v741, 1.442695
    %v744 = vpow.pop %v743
    %v745 = vmul.f32 %v742, 1.442695
    %v746 = vpow.pop %v745
    %v747 = vsel %vm280, %v744, 0.0
    %748 = vadd.xlane.f32.xlu0 %v747
    %v749 = vpop.xlane.xlu0 %748
    %v750 = vsel %vm280, %v746, 0.0
    %751 = vadd.xlane.f32.xlu0 %v750
    %v752 = vpop.xlane.xlu0 %751
    %v753 = vrcp.pop %v749
    %v754 = vrcp.pop %v752
    %v755 = vmul.f32 %v744, %v753
    %v756 = vmul.f32 %v746, %v754
    %v757 = vpack.c.bf16 %v755, %v755
    %v758 = vpack.c.bf16 %v756, %v756
    %759 = vrot.lane.b32.xlu0 %v467, 104
    %v760 = vpop.permute.xlu0 %759
    %v762 = vsel %vm280, %v757, 0
    %v765 = vsel %vm346, %v760, 0
    %767 = vmatpush.bf16.msra.mxu0 0
    %768 = vmatpush.bf16.msra.mxu0 0
    %769 = vmatpush.bf16.msra.mxu0 0
    %770 = vmatpush.bf16.msra.mxu0 0
    %771 = vmatpush.bf16.msra.mxu0 0
    %772 = vmatpush.bf16.msra.mxu0 0
    %773 = vmatpush.bf16.msra.mxu0 0
    %774 = vmatpush.bf16.msra.mxu0 %v765
    %775 = vmatmul.bf16.gmra.mxu0 %v762
    %v776 = vpop.f32.mrf.mxu0
    %v777 = vadd.f32 0.0, %v776
    %v778 = vpop.f32.mrf.mxu0
    %779 = vdwg.mxu0
    %780 = vrot.lane.b32.xlu0 %v491, 104
    %v781 = vpop.permute.xlu0 %780
    %v783 = vsel %vm280, %v758, 0
    %v786 = vsel %vm346, %v781, 0
    %788 = vmatpush.bf16.msra.mxu0 0
    %789 = vmatpush.bf16.msra.mxu0 0
    %790 = vmatpush.bf16.msra.mxu0 0
    %791 = vmatpush.bf16.msra.mxu0 0
    %792 = vmatpush.bf16.msra.mxu0 0
    %793 = vmatpush.bf16.msra.mxu0 0
    %794 = vmatpush.bf16.msra.mxu0 0
    %795 = vmatpush.bf16.msra.mxu0 %v786
    %796 = vmatmul.bf16.gmra.mxu0 %v783
    %v797 = vpop.f32.mrf.mxu0
    %v798 = vadd.f32 0.0, %v797
    %v799 = vpop.f32.mrf.mxu0
    %800 = vdwg.mxu0
    %v801 = vpack.c.bf16 %v798, %v777
    %v803 = vsel %vm280, %v801, 0
    %v806 = vsel %vm346, %v279, 0
    %808 = vmatpush.bf16.msra.mxu0 0
    %809 = vmatpush.bf16.msra.mxu0 0
    %810 = vmatpush.bf16.msra.mxu0 0
    %811 = vmatpush.bf16.msra.mxu0 0
    %812 = vmatpush.bf16.msra.mxu0 0
    %813 = vmatpush.bf16.msra.mxu0 0
    %814 = vmatpush.bf16.msra.mxu0 0
    %815 = vmatpush.bf16.msra.mxu0 %v806
    %816 = vmatmul.bf16.gmra.mxu0 %v803
    %v817 = vpop.f32.mrf.mxu0
    %v818 = vadd.f32 0.0, %v817
    %v819 = vpop.f32.mrf.mxu0
    %v820 = vadd.f32 0.0, %v819
    %821 = vdwg.mxu0
    %v822 = vadd.f32 %v687, %v818
    %v823 = vadd.f32 %v688, %v820
    %v824 = vld [vmem:[%s10] sm:$0x1]
    %v826 = vperm.slane %v824, 0
    %v828 = vadd.f32 %v822, %v826
    %v829 = vadd.f32 %v823, %v826
    %830 = vst [vmem:[#allocation14] sm:$0xff] %v828
    %831 = vst [vmem:[#allocation14 + $0x8] sm:$0xff] %v829
    // Predicated region
    $region74: #{tpu_custom_call.1} parent=1 // pred_check
      _
    $region75: #{tpu_custom_call.1} parent=1 // pred_check_branch
      %833 = sbr.rel (0) target = $region77
    $region76: #{tpu_custom_call.1} parent=1 // pred_region
      %835 = vsyncadd [#allocation4], 0
      %s836 = sshll.u32 [#allocation14], 4
      %s837 = int_to_ptr.vmem [resolvable:$true] %s836
      %s838 = sshll.u32 %s11, 4
      %s839 = int_to_ptr.hbm [resolvable:$true] %s838
      %844 = dma.vmem_to_hbm [thread:$0]  %s837, 256, %s839, [#allocation4], 128, 128, 8
    $region77: #{tpu_custom_call.1} parent=1 // pred_fallthru
      _
    // Predicated region
    $region78: #{tpu_custom_call.1} parent=1 // pred_check
      _
    $region79: #{tpu_custom_call.1} parent=1 // pred_check_branch
      %846 = sbr.rel (0) target = $region81
    $region80: #{tpu_custom_call.1} parent=1 // pred_region
      %848 = dma.done [#allocation4], 256
    $region81: #{tpu_custom_call.1} parent=1 // pred_fallthru
      _
    %849 = vsyncpa [#allocation3], 1
    %850 = vsyncpa [#allocation6], 1
    %851 = vsyncpa [#allocation9], 1
    %852 = vsyncpa [#allocation12], 1
    %853 = vsyncpa [#allocation4], 1

</llo_original>
